<compile_context>
chip_gen: v7x
topology: tpu7x:2x2x1
jax: 0.10.0
libtpu: 0.0.40
codegen_flags: <defaults>
</compile_context>

<pallas_src>
import functools
import math

import jax
import jax.numpy as jnp
from jax.experimental import pallas as pl
from jax.experimental.pallas import tpu as pltpu


def _layernorm(x, gamma, beta, eps=1e-5):
    mean = jnp.mean(x, axis=-1, keepdims=True)
    var = jnp.mean((x - mean) ** 2, axis=-1, keepdims=True)
    return (x - mean) * jax.lax.rsqrt(var + eps) * gamma + beta


def _segreduce_over_positions(x, S, D, op):
    """Reduce over the S position-groups (lane stride D) of a (bt, S*D) array,
    broadcasting the result back to every group.  Uses a circular lane-roll
    tree (XLU) when S is a power of two."""
    if (S & (S - 1)) == 0:
        y, shift = x, D
        while shift < S * D:
            y = op(y, pltpu.roll(y, shift=shift, axis=1))
            shift *= 2
        return y
    # TODO(synk): non-power-of-two S falls back to a reshape (relayout copy).
    bt = x.shape[0]
    r = x.reshape(bt, S, D)
    acc = r[:, 0, :]
    for s in range(1, S):
        acc = op(acc, r[:, s, :])
    return jnp.tile(acc, (1, S))


def transformer_last_token_kernel(
    x_ref,                      # (bt, S*F)  f32, lane-dense
    w_emb_ref, emb_bias_ref,    # (S*F, S*D) bf16, (1, S*D) f32  (bias + PE)
    w_qkv_ref, qkv_bias_ref,    # (S*D, 3*S*D) bf16, (1, 3*S*D) f32
    hs_ref,                     # (S*D, S*D) bf16  head-sum-and-broadcast
    w_ao_ref, b_ao_ref,         # (S*D, D) bf16 stacked out-proj, (1, D) f32
    w1_ref, b1_ref, w2_ref, b2_ref,
    g1_ref, bt1_ref, g2_ref, bt2_ref,
    out_ref,                    # (bt, D) f32  last-token hidden state
    *, S, D,
):
    f32 = jnp.float32
    bf16 = jnp.bfloat16
    SD = S * D

    # ---- embed layer + positional encoding, flat (bt, S*D) ----
    emb = jnp.dot(x_ref[...].astype(bf16), w_emb_ref[...],
                  preferred_element_type=f32) + emb_bias_ref[...]

    # ---- fused Q/K/V projection (Q = scaled, last-token, tiled over S) ----
    qkv = jnp.dot(emb.astype(bf16), w_qkv_ref[...],
                  preferred_element_type=f32) + qkv_bias_ref[...]   # (bt, 3*SD)
    q_tiled = qkv[:, :SD]            # 128-lane-group aligned slices
    k_flat = qkv[:, SD:2 * SD]
    v_flat = qkv[:, 2 * SD:]

    # ---- per-head scores, broadcast over the head's lanes ----
    qk = q_tiled * k_flat                                           # (bt, SD) f32
    hs = jnp.dot(qk.astype(bf16), hs_ref[...],
                 preferred_element_type=f32)                        # (bt, SD)

    # ---- softmax over keys (position groups, lane stride D) ----
    m = _segreduce_over_positions(hs, S, D, jnp.maximum)
    p = jnp.exp(hs - m)
    den = _segreduce_over_positions(p, S, D, jnp.add)
    p = p * pl.reciprocal(den, approx=True)                         # (bt, SD)

    # ---- weighted value sum + attention output projection, one matmul ----
    pv = (p * v_flat).astype(bf16)                                  # (bt, SD)
    attn = jnp.dot(pv, w_ao_ref[...],
                   preferred_element_type=f32) + b_ao_ref[...]      # (bt, D)

    # ---- residual + layernorm 1 (last token only) ----
    emb_last = emb[:, (S - 1) * D:]                                 # (bt, D) f32
    res1 = _layernorm(emb_last + attn, g1_ref[...], bt1_ref[...])

    # ---- feed-forward ----
    ff = jnp.dot(res1.astype(bf16), w1_ref[...],
                 preferred_element_type=f32) + b1_ref[...]
    ff = jnp.maximum(ff, 0.0)
    ff = jnp.dot(ff.astype(bf16), w2_ref[...],
                 preferred_element_type=f32) + b2_ref[...]

    # ---- residual + layernorm 2 ----
    res2 = _layernorm(res1 + ff, g2_ref[...], bt2_ref[...])         # (bt, D)
    out_ref[...] = res2.astype(out_ref.dtype)


def _build_resident_operands(params, S):
    """Wrapper-side weight prep: block-diagonal / stacked bf16 weights."""
    f32 = jnp.float32
    bf16 = jnp.bfloat16
    D, F = params["w_emb"].shape
    SD = S * D

    eye_S = jnp.eye(S, dtype=f32)

    # embed: block-diagonal (S*F, S*D); bias folds in the positional encoding.
    w_emb_bd = jnp.einsum("st,fd->sftd", eye_S,
                          params["w_emb"].T.astype(f32)).reshape(S * F, SD)
    emb_bias = jnp.tile(params["b_emb"], (1, S)) + params["pe"][:S].reshape(1, SD)

    # fused Q|K|V: (S*D, 3*S*D).  Q columns read only the last position of the
    # input and replicate the (scaled) result into every position group.
    w_in, b_in = params["w_in"], params["b_in"]
    nhead_hd = D // max(1, (params.get("nhead", 0) or 0)) if False else None  # unused
    return_list = None  # placeholder to keep linters quiet
    del nhead_hd, return_list

    scale = params["_scale"]
    w_q_t = w_in[:D].T.astype(f32) * scale
    w_k_t = w_in[D:2 * D].T.astype(f32)
    w_v_t = w_in[2 * D:].T.astype(f32)
    b_q = b_in[:, :D] * scale
    b_k = b_in[:, D:2 * D]
    b_v = b_in[:, 2 * D:]

    q_cols = jnp.zeros((SD, SD), f32).at[(S - 1) * D:, :].set(
        jnp.tile(w_q_t, (1, S)))
    k_cols = jnp.einsum("st,ij->sitj", eye_S, w_k_t).reshape(SD, SD)
    v_cols = jnp.einsum("st,ij->sitj", eye_S, w_v_t).reshape(SD, SD)
    w_qkv = jnp.concatenate([q_cols, k_cols, v_cols], axis=1)
    qkv_bias = jnp.concatenate([jnp.tile(b_q, (1, S)),
                                jnp.tile(b_k, (1, S)),
                                jnp.tile(b_v, (1, S))], axis=1)

    # head-sum-and-broadcast selector (block-diag over positions).
    hd = params["_head_dim"]
    head_id = jnp.arange(D) // hd
    head_eq = (head_id[:, None] == head_id[None, :]).astype(f32)
    hs_sel = jnp.einsum("st,ij->sitj", eye_S, head_eq).reshape(SD, SD)

    # attention out-projection stacked over positions: folds the sum over keys.
    w_ao_stack = jnp.tile(params["w_ao"].T.astype(f32), (S, 1))     # (S*D, D)

    return [
        w_emb_bd.astype(bf16), emb_bias,
        w_qkv.astype(bf16), qkv_bias,
        hs_sel.astype(bf16),
        w_ao_stack.astype(bf16), params["b_ao"],
        params["w1"].T.astype(bf16), params["b1"],
        params["w2"].T.astype(bf16), params["b2"],
        params["g1"], params["bt1"], params["g2"], params["bt2"],
    ]


def _pick_block_batch(B):
    # >=256 rows per grid step when the batch allows it (bt*S >= 256 at S=8),
    # while keeping >=2 grid steps on large batches (v7x has 2 TensorCores).
    for cand in (128, 64, 32):
        if B % cand == 0 and B >= 2 * cand:
            return cand
    return B


def transformer_encoder(x, params, nhead, *, block_batch=None):
    """Matches TransformerEncoder.forward(x) (eval mode) -> shape (B,)."""
    B, S, F = x.shape
    D = params["w_emb"].shape[0]
    hd = D // nhead

    params = dict(params)
    params["_scale"] = 1.0 / math.sqrt(hd)
    params["_head_dim"] = hd

    bt = _pick_block_batch(B) if block_batch is None else min(block_batch, B)
    # TODO(synk): non-divisible batch tails need padding or a masked cdiv grid.
    assert B % bt == 0, "batch must be divisible by the batch tile"
    assert bt == B or bt % 8 == 0, "batch tile must be sublane-aligned"
    grid = (B // bt,)

    x_flat = x.reshape(B, S * F)                       # lane-dense input
    resident = _build_resident_operands(params, S)

    def _resident_spec(arr):
        zeros = (0,) * arr.ndim
        return pl.BlockSpec(arr.shape, lambda b, _z=zeros: _z)

    in_specs = [pl.BlockSpec((bt, S * F), lambda b: (b, 0))]
    in_specs += [_resident_spec(a) for a in resident]

    hidden = pl.pallas_call(
        functools.partial(transformer_last_token_kernel, S=S, D=D),
        grid=grid,
        in_specs=in_specs,
        out_specs=pl.BlockSpec((bt, D), lambda b: (b, 0)),
        out_shape=jax.ShapeDtypeStruct((B, D), jnp.float32),
        compiler_params=pltpu.CompilerParams(
            dimension_semantics=("parallel",)),
    )(x_flat, *resident)

    # Final (D -> 1) output linear done in XLA (tiny), then squeeze -> (B,)
    out = hidden @ params["w_o"].T + params["b_o"]     # (B, 1)
    return out[:, 0]


# ---------------- pure-JAX f32 reference (full module semantics) ----------------
def reference_forward(x, p, nhead):
    D = p["w_emb"].shape[0]
    hd = D // nhead
    emb = x @ p["w_emb"].T + p["b_emb"] + p["pe"][None]
    q = emb @ p["w_in"][:D].T + p["b_in"][:, :D]
    k = emb @ p["w_in"][D:2 * D].T + p["b_in"][:, D:2 * D]
    v = emb @ p["w_in"][2 * D:].T + p["b_in"][:, 2 * D:]
    B, S, _ = emb.shape
    qh = q.reshape(B, S, nhead, hd).transpose(0, 2, 1, 3)
    kh = k.reshape(B, S, nhead, hd).transpose(0, 2, 1, 3)
    vh = v.reshape(B, S, nhead, hd).transpose(0, 2, 1, 3)
    s = jnp.einsum("bhqd,bhkd->bhqk", qh, kh) / math.sqrt(hd)
    w = jax.nn.softmax(s, axis=-1)
    a = jnp.einsum("bhqk,bhkd->bhqd", w, vh).transpose(0, 2, 1, 3).reshape(B, S, D)
    a = a @ p["w_ao"].T + p["b_ao"]

    def ln(z, g, b):
        m = z.mean(-1, keepdims=True)
        vv = ((z - m) ** 2).mean(-1, keepdims=True)
        return (z - m) * jax.lax.rsqrt(vv + 1e-5) * g + b

    r1 = ln(emb + a, p["g1"], p["bt1"])
    ff = jnp.maximum(r1 @ p["w1"].T + p["b1"], 0.0) @ p["w2"].T + p["b2"]
    r2 = ln(r1 + ff, p["g2"], p["bt2"])
    return (r2[:, -1, :] @ p["w_o"].T + p["b_o"])[:, 0]


def make_positional_encoding(seq_len, d_model):
    position = jnp.arange(seq_len, dtype=jnp.float32)[:, None]
    div_term = jnp.exp(jnp.arange(0, d_model, 2, dtype=jnp.float32)
                       * (-math.log(10000.0) / d_model))
    pe = jnp.zeros((seq_len, d_model), dtype=jnp.float32)
    pe = pe.at[:, 0::2].set(jnp.sin(position * div_term))
    pe = pe.at[:, 1::2].set(jnp.cos(position * div_term))
    return pe


if __name__ == "__main__":
    B, S, F = 16, 8, 16         # batch, sequence, input_size
    D, NHEAD = 32, 4            # d_model, nhead; dim_feedforward=None -> D
    DFF = D

    key = jax.random.PRNGKey(0)
    kx, kp = jax.random.split(key)
    x = jax.random.normal(kx, (B, S, F), dtype=jnp.float32)

    ks = jax.random.split(kp, 10)
    params = {
        "pe": make_positional_encoding(S, D),
        "w_emb": 0.1 * jax.random.normal(ks[0], (D, F), jnp.float32),
        "b_emb": 0.1 * jax.random.normal(ks[1], (1, D), jnp.float32),
        "w_in": 0.1 * jax.random.normal(ks[2], (3 * D, D), jnp.float32),
        "b_in": 0.1 * jax.random.normal(ks[3], (1, 3 * D), jnp.float32),
        "w_ao": 0.1 * jax.random.normal(ks[4], (D, D), jnp.float32),
        "b_ao": 0.1 * jax.random.normal(ks[5], (1, D), jnp.float32),
        "w1": 0.1 * jax.random.normal(ks[6], (DFF, D), jnp.float32),
        "b1": 0.1 * jax.random.normal(ks[7], (1, DFF), jnp.float32),
        "w2": 0.1 * jax.random.normal(ks[8], (D, DFF), jnp.float32),
        "b2": 0.1 * jax.random.normal(ks[9], (1, D), jnp.float32),
        "g1": jnp.ones((1, D), jnp.float32),
        "bt1": jnp.zeros((1, D), jnp.float32),
        "g2": jnp.ones((1, D), jnp.float32),
        "bt2": jnp.zeros((1, D), jnp.float32),
        "w_o": 0.1 * jax.random.normal(jax.random.PRNGKey(123), (1, D), jnp.float32),
        "b_o": 0.1 * jnp.ones((1, 1), jnp.float32),
    }

    ref = jax.block_until_ready(reference_forward(x, params, NHEAD))

    # default batch tile (small batch -> grid=(1,), v5e/v6e advice)
    out1 = jax.block_until_ready(transformer_encoder(x, params, NHEAD))
    # explicit smaller tile -> grid=(2,) (keeps both v7x TensorCores busy)
    out2 = jax.block_until_ready(
        transformer_encoder(x, params, NHEAD, block_batch=8))

    assert out1.shape == (B,) and out2.shape == (B,)
    # bf16 matmul operands in the kernel -> loosened tolerance vs f32 reference
    assert jnp.allclose(out1, ref, atol=5e-2, rtol=5e-2), (out1, ref)
    assert jnp.allclose(out2, ref, atol=5e-2, rtol=5e-2), (out2, ref)
    print("KERNEL_OK")
</pallas_src>

<mosaic_0001>
module attributes {stable_mosaic.version = 11 : i64} {
  func.func @transformer_last_token_kernel(%arg0: i32, %arg1: memref<16x128xf32, #tpu.memory_space<vmem>>, %arg2: memref<128x256xbf16, #tpu.memory_space<vmem>>, %arg3: memref<1x256xf32, #tpu.memory_space<vmem>>, %arg4: memref<256x768xbf16, #tpu.memory_space<vmem>>, %arg5: memref<1x768xf32, #tpu.memory_space<vmem>>, %arg6: memref<256x256xbf16, #tpu.memory_space<vmem>>, %arg7: memref<256x32xbf16, #tpu.memory_space<vmem>>, %arg8: memref<1x32xf32, #tpu.memory_space<vmem>>, %arg9: memref<32x32xbf16, #tpu.memory_space<vmem>>, %arg10: memref<1x32xf32, #tpu.memory_space<vmem>>, %arg11: memref<32x32xbf16, #tpu.memory_space<vmem>>, %arg12: memref<1x32xf32, #tpu.memory_space<vmem>>, %arg13: memref<1x32xf32, #tpu.memory_space<vmem>>, %arg14: memref<1x32xf32, #tpu.memory_space<vmem>>, %arg15: memref<1x32xf32, #tpu.memory_space<vmem>>, %arg16: memref<1x32xf32, #tpu.memory_space<vmem>>, %arg17: memref<16x32xf32, #tpu.memory_space<vmem>>) attributes {dimension_semantics = [#tpu.dimension_semantics<parallel>], iteration_bounds = array<i64: 1>, scalar_prefetch = 0 : i64, scratch_operands = 0 : i64, tpu.core_type = #tpu.core_type<tc>, window_params = [{transform_indices = @transform_0, window_bounds = array<i64: 16, 128>}, {pipeline_mode = #tpu.pipeline_mode<synchronous>, transform_indices = @transform_1, window_bounds = array<i64: 128, 256>}, {pipeline_mode = #tpu.pipeline_mode<synchronous>, transform_indices = @transform_2, window_bounds = array<i64: 1, 256>}, {pipeline_mode = #tpu.pipeline_mode<synchronous>, transform_indices = @transform_3, window_bounds = array<i64: 256, 768>}, {pipeline_mode = #tpu.pipeline_mode<synchronous>, transform_indices = @transform_4, window_bounds = array<i64: 1, 768>}, {pipeline_mode = #tpu.pipeline_mode<synchronous>, transform_indices = @transform_5, window_bounds = array<i64: 256, 256>}, {pipeline_mode = #tpu.pipeline_mode<synchronous>, transform_indices = @transform_6, window_bounds = array<i64: 256, 32>}, {pipeline_mode = #tpu.pipeline_mode<synchronous>, transform_indices = @transform_7, window_bounds = array<i64: 1, 32>}, {pipeline_mode = #tpu.pipeline_mode<synchronous>, transform_indices = @transform_8, window_bounds = array<i64: 32, 32>}, {pipeline_mode = #tpu.pipeline_mode<synchronous>, transform_indices = @transform_9, window_bounds = array<i64: 1, 32>}, {pipeline_mode = #tpu.pipeline_mode<synchronous>, transform_indices = @transform_10, window_bounds = array<i64: 32, 32>}, {pipeline_mode = #tpu.pipeline_mode<synchronous>, transform_indices = @transform_11, window_bounds = array<i64: 1, 32>}, {pipeline_mode = #tpu.pipeline_mode<synchronous>, transform_indices = @transform_12, window_bounds = array<i64: 1, 32>}, {pipeline_mode = #tpu.pipeline_mode<synchronous>, transform_indices = @transform_13, window_bounds = array<i64: 1, 32>}, {pipeline_mode = #tpu.pipeline_mode<synchronous>, transform_indices = @transform_14, window_bounds = array<i64: 1, 32>}, {pipeline_mode = #tpu.pipeline_mode<synchronous>, transform_indices = @transform_15, window_bounds = array<i64: 1, 32>}, {transform_indices = @transform_16, window_bounds = array<i64: 16, 32>}]} {
    %c0 = arith.constant 0 : index
    %c0_0 = arith.constant 0 : index
    %0 = vector.load %arg1[%c0, %c0_0] : memref<16x128xf32, #tpu.memory_space<vmem>>, vector<16x128xf32>
    %1 = arith.truncf %0 : vector<16x128xf32> to vector<16x128xbf16>
    %c0_1 = arith.constant 0 : index
    %c0_2 = arith.constant 0 : index
    %2 = vector.load %arg2[%c0_1, %c0_2] : memref<128x256xbf16, #tpu.memory_space<vmem>>, vector<128x256xbf16>
    %cst = arith.constant dense<0.000000e+00> : vector<16x256xf32>
    %3 = tpu.matmul %1, %2, %cst {dimension_numbers = #tpu.dot_dimension_numbers<[1], [0], [0], [1], [0, 0, 1, 1], [], []>} : vector<16x128xbf16>, vector<128x256xbf16>, vector<16x256xf32> -> vector<16x256xf32>
    %c0_3 = arith.constant 0 : index
    %c0_4 = arith.constant 0 : index
    %4 = vector.load %arg3[%c0_3, %c0_4] : memref<1x256xf32, #tpu.memory_space<vmem>>, vector<1x256xf32>
    %5 = vector.broadcast %4 : vector<1x256xf32> to vector<16x256xf32>
    %6 = arith.addf %3, %5 : vector<16x256xf32>
    %7 = arith.truncf %6 : vector<16x256xf32> to vector<16x256xbf16>
    %c0_5 = arith.constant 0 : index
    %c0_6 = arith.constant 0 : index
    %8 = vector.load %arg4[%c0_5, %c0_6] : memref<256x768xbf16, #tpu.memory_space<vmem>>, vector<256x768xbf16>
    %cst_7 = arith.constant dense<0.000000e+00> : vector<16x768xf32>
    %9 = tpu.matmul %7, %8, %cst_7 {dimension_numbers = #tpu.dot_dimension_numbers<[1], [0], [0], [1], [0, 0, 1, 1], [], []>} : vector<16x256xbf16>, vector<256x768xbf16>, vector<16x768xf32> -> vector<16x768xf32>
    %c0_8 = arith.constant 0 : index
    %c0_9 = arith.constant 0 : index
    %10 = vector.load %arg5[%c0_8, %c0_9] : memref<1x768xf32, #tpu.memory_space<vmem>>, vector<1x768xf32>
    %11 = vector.broadcast %10 : vector<1x768xf32> to vector<16x768xf32>
    %12 = arith.addf %9, %11 : vector<16x768xf32>
    %13 = vector.extract_strided_slice %12 {offsets = [0, 0], sizes = [16, 256], strides = [1, 1]} : vector<16x768xf32> to vector<16x256xf32>
    %14 = vector.extract_strided_slice %12 {offsets = [0, 256], sizes = [16, 256], strides = [1, 1]} : vector<16x768xf32> to vector<16x256xf32>
    %15 = vector.extract_strided_slice %12 {offsets = [0, 512], sizes = [16, 256], strides = [1, 1]} : vector<16x768xf32> to vector<16x256xf32>
    %16 = arith.mulf %13, %14 : vector<16x256xf32>
    %17 = arith.truncf %16 : vector<16x256xf32> to vector<16x256xbf16>
    %c0_10 = arith.constant 0 : index
    %c0_11 = arith.constant 0 : index
    %18 = vector.load %arg6[%c0_10, %c0_11] : memref<256x256xbf16, #tpu.memory_space<vmem>>, vector<256x256xbf16>
    %cst_12 = arith.constant dense<0.000000e+00> : vector<16x256xf32>
    %19 = tpu.matmul %17, %18, %cst_12 {dimension_numbers = #tpu.dot_dimension_numbers<[1], [0], [0], [1], [0, 0, 1, 1], [], []>} : vector<16x256xbf16>, vector<256x256xbf16>, vector<16x256xf32> -> vector<16x256xf32>
    %c32_i32 = arith.constant 32 : i32
    %20 = tpu.dynamic_rotate %19 by %c32_i32 dim 1 : vector<16x256xf32>, i32 -> vector<16x256xf32>
    %21 = arith.maximumf %19, %20 : vector<16x256xf32>
    %c64_i32 = arith.constant 64 : i32
    %22 = tpu.dynamic_rotate %21 by %c64_i32 dim 1 : vector<16x256xf32>, i32 -> vector<16x256xf32>
    %23 = arith.maximumf %21, %22 : vector<16x256xf32>
    %c128_i32 = arith.constant 128 : i32
    %24 = tpu.dynamic_rotate %23 by %c128_i32 dim 1 : vector<16x256xf32>, i32 -> vector<16x256xf32>
    %25 = arith.maximumf %23, %24 : vector<16x256xf32>
    %26 = arith.subf %19, %25 : vector<16x256xf32>
    %27 = math.exp %26 : vector<16x256xf32>
    %c32_i32_13 = arith.constant 32 : i32
    %28 = tpu.dynamic_rotate %27 by %c32_i32_13 dim 1 : vector<16x256xf32>, i32 -> vector<16x256xf32>
    %29 = arith.addf %27, %28 : vector<16x256xf32>
    %c64_i32_14 = arith.constant 64 : i32
    %30 = tpu.dynamic_rotate %29 by %c64_i32_14 dim 1 : vector<16x256xf32>, i32 -> vector<16x256xf32>
    %31 = arith.addf %29, %30 : vector<16x256xf32>
    %c128_i32_15 = arith.constant 128 : i32
    %32 = tpu.dynamic_rotate %31 by %c128_i32_15 dim 1 : vector<16x256xf32>, i32 -> vector<16x256xf32>
    %33 = arith.addf %31, %32 : vector<16x256xf32>
    %34 = tpu.reciprocal %33 {approx = true} : vector<16x256xf32> -> vector<16x256xf32>
    %35 = arith.mulf %27, %34 : vector<16x256xf32>
    %36 = arith.mulf %35, %15 : vector<16x256xf32>
    %37 = arith.truncf %36 : vector<16x256xf32> to vector<16x256xbf16>
    %c0_16 = arith.constant 0 : index
    %c0_17 = arith.constant 0 : index
    %38 = vector.load %arg7[%c0_16, %c0_17] : memref<256x32xbf16, #tpu.memory_space<vmem>>, vector<256x32xbf16>
    %cst_18 = arith.constant dense<0.000000e+00> : vector<16x32xf32>
    %39 = tpu.matmul %37, %38, %cst_18 {dimension_numbers = #tpu.dot_dimension_numbers<[1], [0], [0], [1], [0, 0, 1, 1], [], []>} : vector<16x256xbf16>, vector<256x32xbf16>, vector<16x32xf32> -> vector<16x32xf32>
    %c0_19 = arith.constant 0 : index
    %c0_20 = arith.constant 0 : index
    %40 = vector.load %arg8[%c0_19, %c0_20] : memref<1x32xf32, #tpu.memory_space<vmem>>, vector<1x32xf32>
    %41 = vector.broadcast %40 : vector<1x32xf32> to vector<16x32xf32>
    %42 = arith.addf %39, %41 : vector<16x32xf32>
    %43 = vector.extract_strided_slice %6 {offsets = [0, 224], sizes = [16, 32], strides = [1, 1]} : vector<16x256xf32> to vector<16x32xf32>
    %44 = arith.addf %43, %42 : vector<16x32xf32>
    %c0_21 = arith.constant 0 : index
    %c0_22 = arith.constant 0 : index
    %45 = vector.load %arg13[%c0_21, %c0_22] : memref<1x32xf32, #tpu.memory_space<vmem>>, vector<1x32xf32>
    %c0_23 = arith.constant 0 : index
    %c0_24 = arith.constant 0 : index
    %46 = vector.load %arg14[%c0_23, %c0_24] : memref<1x32xf32, #tpu.memory_space<vmem>>, vector<1x32xf32>
    %cst_25 = arith.constant dense<0.000000e+00> : vector<16xf32>
    %47 = vector.multi_reduction <add>, %44, %cst_25 [1] : vector<16x32xf32> to vector<16xf32>
    %48 = vector.shape_cast %47 : vector<16xf32> to vector<16x1xf32>
    %cst_26 = arith.constant 3.200000e+01 : f32
    %49 = vector.broadcast %cst_26 : f32 to vector<16x1xf32>
    %50 = arith.divf %48, %49 : vector<16x1xf32>
    %51 = vector.broadcast %50 : vector<16x1xf32> to vector<16x32xf32>
    %52 = arith.subf %44, %51 : vector<16x32xf32>
    %53 = arith.mulf %52, %52 : vector<16x32xf32>
    %cst_27 = arith.constant dense<0.000000e+00> : vector<16xf32>
    %54 = vector.multi_reduction <add>, %53, %cst_27 [1] : vector<16x32xf32> to vector<16xf32>
    %55 = vector.shape_cast %54 : vector<16xf32> to vector<16x1xf32>
    %cst_28 = arith.constant 3.200000e+01 : f32
    %56 = vector.broadcast %cst_28 : f32 to vector<16x1xf32>
    %57 = arith.divf %55, %56 : vector<16x1xf32>
    %58 = vector.broadcast %50 : vector<16x1xf32> to vector<16x32xf32>
    %59 = arith.subf %44, %58 : vector<16x32xf32>
    %cst_29 = arith.constant 9.99999974E-6 : f32
    %60 = vector.broadcast %cst_29 : f32 to vector<16x1xf32>
    %61 = arith.addf %57, %60 : vector<16x1xf32>
    %62 = math.rsqrt %61 : vector<16x1xf32>
    %63 = vector.broadcast %62 : vector<16x1xf32> to vector<16x32xf32>
    %64 = arith.mulf %59, %63 : vector<16x32xf32>
    %65 = vector.broadcast %45 : vector<1x32xf32> to vector<16x32xf32>
    %66 = arith.mulf %64, %65 : vector<16x32xf32>
    %67 = vector.broadcast %46 : vector<1x32xf32> to vector<16x32xf32>
    %68 = arith.addf %66, %67 : vector<16x32xf32>
    %69 = arith.truncf %68 : vector<16x32xf32> to vector<16x32xbf16>
    %c0_30 = arith.constant 0 : index
    %c0_31 = arith.constant 0 : index
    %70 = vector.load %arg9[%c0_30, %c0_31] : memref<32x32xbf16, #tpu.memory_space<vmem>>, vector<32x32xbf16>
    %cst_32 = arith.constant dense<0.000000e+00> : vector<16x32xf32>
    %71 = tpu.matmul %69, %70, %cst_32 {dimension_numbers = #tpu.dot_dimension_numbers<[1], [0], [0], [1], [0, 0, 1, 1], [], []>} : vector<16x32xbf16>, vector<32x32xbf16>, vector<16x32xf32> -> vector<16x32xf32>
    %c0_33 = arith.constant 0 : index
    %c0_34 = arith.constant 0 : index
    %72 = vector.load %arg10[%c0_33, %c0_34] : memref<1x32xf32, #tpu.memory_space<vmem>>, vector<1x32xf32>
    %73 = vector.broadcast %72 : vector<1x32xf32> to vector<16x32xf32>
    %74 = arith.addf %71, %73 : vector<16x32xf32>
    %cst_35 = arith.constant 0.000000e+00 : f32
    %75 = vector.broadcast %cst_35 : f32 to vector<16x32xf32>
    %76 = arith.maximumf %74, %75 : vector<16x32xf32>
    %77 = arith.truncf %76 : vector<16x32xf32> to vector<16x32xbf16>
    %c0_36 = arith.constant 0 : index
    %c0_37 = arith.constant 0 : index
    %78 = vector.load %arg11[%c0_36, %c0_37] : memref<32x32xbf16, #tpu.memory_space<vmem>>, vector<32x32xbf16>
    %cst_38 = arith.constant dense<0.000000e+00> : vector<16x32xf32>
    %79 = tpu.matmul %77, %78, %cst_38 {dimension_numbers = #tpu.dot_dimension_numbers<[1], [0], [0], [1], [0, 0, 1, 1], [], []>} : vector<16x32xbf16>, vector<32x32xbf16>, vector<16x32xf32> -> vector<16x32xf32>
    %c0_39 = arith.constant 0 : index
    %c0_40 = arith.constant 0 : index
    %80 = vector.load %arg12[%c0_39, %c0_40] : memref<1x32xf32, #tpu.memory_space<vmem>>, vector<1x32xf32>
    %81 = vector.broadcast %80 : vector<1x32xf32> to vector<16x32xf32>
    %82 = arith.addf %79, %81 : vector<16x32xf32>
    %83 = arith.addf %68, %82 : vector<16x32xf32>
    %c0_41 = arith.constant 0 : index
    %c0_42 = arith.constant 0 : index
    %84 = vector.load %arg15[%c0_41, %c0_42] : memref<1x32xf32, #tpu.memory_space<vmem>>, vector<1x32xf32>
    %c0_43 = arith.constant 0 : index
    %c0_44 = arith.constant 0 : index
    %85 = vector.load %arg16[%c0_43, %c0_44] : memref<1x32xf32, #tpu.memory_space<vmem>>, vector<1x32xf32>
    %cst_45 = arith.constant dense<0.000000e+00> : vector<16xf32>
    %86 = vector.multi_reduction <add>, %83, %cst_45 [1] : vector<16x32xf32> to vector<16xf32>
    %87 = vector.shape_cast %86 : vector<16xf32> to vector<16x1xf32>
    %cst_46 = arith.constant 3.200000e+01 : f32
    %88 = vector.broadcast %cst_46 : f32 to vector<16x1xf32>
    %89 = arith.divf %87, %88 : vector<16x1xf32>
    %90 = vector.broadcast %89 : vector<16x1xf32> to vector<16x32xf32>
    %91 = arith.subf %83, %90 : vector<16x32xf32>
    %92 = arith.mulf %91, %91 : vector<16x32xf32>
    %cst_47 = arith.constant dense<0.000000e+00> : vector<16xf32>
    %93 = vector.multi_reduction <add>, %92, %cst_47 [1] : vector<16x32xf32> to vector<16xf32>
    %94 = vector.shape_cast %93 : vector<16xf32> to vector<16x1xf32>
    %cst_48 = arith.constant 3.200000e+01 : f32
    %95 = vector.broadcast %cst_48 : f32 to vector<16x1xf32>
    %96 = arith.divf %94, %95 : vector<16x1xf32>
    %97 = vector.broadcast %89 : vector<16x1xf32> to vector<16x32xf32>
    %98 = arith.subf %83, %97 : vector<16x32xf32>
    %cst_49 = arith.constant 9.99999974E-6 : f32
    %99 = vector.broadcast %cst_49 : f32 to vector<16x1xf32>
    %100 = arith.addf %96, %99 : vector<16x1xf32>
    %101 = math.rsqrt %100 : vector<16x1xf32>
    %102 = vector.broadcast %101 : vector<16x1xf32> to vector<16x32xf32>
    %103 = arith.mulf %98, %102 : vector<16x32xf32>
    %104 = vector.broadcast %84 : vector<1x32xf32> to vector<16x32xf32>
    %105 = arith.mulf %103, %104 : vector<16x32xf32>
    %106 = vector.broadcast %85 : vector<1x32xf32> to vector<16x32xf32>
    %107 = arith.addf %105, %106 : vector<16x32xf32>
    %c0_50 = arith.constant 0 : index
    %c0_51 = arith.constant 0 : index
    %108 = vector.load %arg17[%c0_50, %c0_51] : memref<16x32xf32, #tpu.memory_space<vmem>>, vector<16x32xf32>
    tpu.vector_store %arg17[%c0_50, %c0_51], %107 {strides = array<i32>} : memref<16x32xf32, #tpu.memory_space<vmem>>, vector<16x32xf32>,
    return
  }
  func.func @transform_0(%arg0: i32) -> (i32, i32) {
    %c0_i32 = arith.constant 0 : i32
    %c0_i32_0 = arith.constant 0 : i32
    return %arg0, %c0_i32 : i32, i32
  }
  func.func @transform_1(%arg0: i32) -> (i32, i32) {
    %c0_i32 = arith.constant 0 : i32
    %c0_i32_0 = arith.constant 0 : i32
    %c0_i32_1 = arith.constant 0 : i32
    return %c0_i32, %c0_i32_0 : i32, i32
  }
  func.func @transform_2(%arg0: i32) -> (i32, i32) {
    %c0_i32 = arith.constant 0 : i32
    %c0_i32_0 = arith.constant 0 : i32
    %c0_i32_1 = arith.constant 0 : i32
    return %c0_i32, %c0_i32_0 : i32, i32
  }
  func.func @transform_3(%arg0: i32) -> (i32, i32) {
    %c0_i32 = arith.constant 0 : i32
    %c0_i32_0 = arith.constant 0 : i32
    %c0_i32_1 = arith.constant 0 : i32
    return %c0_i32, %c0_i32_0 : i32, i32
  }
  func.func @transform_4(%arg0: i32) -> (i32, i32) {
    %c0_i32 = arith.constant 0 : i32
    %c0_i32_0 = arith.constant 0 : i32
    %c0_i32_1 = arith.constant 0 : i32
    return %c0_i32, %c0_i32_0 : i32, i32
  }
  func.func @transform_5(%arg0: i32) -> (i32, i32) {
    %c0_i32 = arith.constant 0 : i32
    %c0_i32_0 = arith.constant 0 : i32
    %c0_i32_1 = arith.constant 0 : i32
    return %c0_i32, %c0_i32_0 : i32, i32
  }
  func.func @transform_6(%arg0: i32) -> (i32, i32) {
    %c0_i32 = arith.constant 0 : i32
    %c0_i32_0 = arith.constant 0 : i32
    %c0_i32_1 = arith.constant 0 : i32
    return %c0_i32, %c0_i32_0 : i32, i32
  }
  func.func @transform_7(%arg0: i32) -> (i32, i32) {
    %c0_i32 = arith.constant 0 : i32
    %c0_i32_0 = arith.constant 0 : i32
    %c0_i32_1 = arith.constant 0 : i32
    return %c0_i32, %c0_i32_0 : i32, i32
  }
  func.func @transform_8(%arg0: i32) -> (i32, i32) {
    %c0_i32 = arith.constant 0 : i32
    %c0_i32_0 = arith.constant 0 : i32
    %c0_i32_1 = arith.constant 0 : i32
    return %c0_i32, %c0_i32_0 : i32, i32
  }
  func.func @transform_9(%arg0: i32) -> (i32, i32) {
    %c0_i32 = arith.constant 0 : i32
    %c0_i32_0 = arith.constant 0 : i32
    %c0_i32_1 = arith.constant 0 : i32
    return %c0_i32, %c0_i32_0 : i32, i32
  }
  func.func @transform_10(%arg0: i32) -> (i32, i32) {
    %c0_i32 = arith.constant 0 : i32
    %c0_i32_0 = arith.constant 0 : i32
    %c0_i32_1 = arith.constant 0 : i32
    return %c0_i32, %c0_i32_0 : i32, i32
  }
  func.func @transform_11(%arg0: i32) -> (i32, i32) {
    %c0_i32 = arith.constant 0 : i32
    %c0_i32_0 = arith.constant 0 : i32
    %c0_i32_1 = arith.constant 0 : i32
    return %c0_i32, %c0_i32_0 : i32, i32
  }
  func.func @transform_12(%arg0: i32) -> (i32, i32) {
    %c0_i32 = arith.constant 0 : i32
    %c0_i32_0 = arith.constant 0 : i32
    %c0_i32_1 = arith.constant 0 : i32
    return %c0_i32, %c0_i32_0 : i32, i32
  }
  func.func @transform_13(%arg0: i32) -> (i32, i32) {
    %c0_i32 = arith.constant 0 : i32
    %c0_i32_0 = arith.constant 0 : i32
    %c0_i32_1 = arith.constant 0 : i32
    return %c0_i32, %c0_i32_0 : i32, i32
  }
  func.func @transform_14(%arg0: i32) -> (i32, i32) {
    %c0_i32 = arith.constant 0 : i32
    %c0_i32_0 = arith.constant 0 : i32
    %c0_i32_1 = arith.constant 0 : i32
    return %c0_i32, %c0_i32_0 : i32, i32
  }
  func.func @transform_15(%arg0: i32) -> (i32, i32) {
    %c0_i32 = arith.constant 0 : i32
    %c0_i32_0 = arith.constant 0 : i32
    %c0_i32_1 = arith.constant 0 : i32
    return %c0_i32, %c0_i32_0 : i32, i32
  }
  func.func @transform_16(%arg0: i32) -> (i32, i32) {
    %c0_i32 = arith.constant 0 : i32
    %c0_i32_0 = arith.constant 0 : i32
    return %arg0, %c0_i32 : i32, i32
  }
}

</mosaic_0001>

<llo_original>
// kernel: tpu_custom_call.1
$region0: #{tpu_custom_call.1}
  #allocation0 [shape = 'u32[]', space=smem, size = 0x4, offset = 0x4, fixed_abs, tag = 'smem constant byte address 0x4 - core index']
  #allocation1 [shape = 'u32[144,128]{1,0:T(1,128)}', space=vmem, size = 0x12000, scoped, tag = 'internal scratch']
  %s0 = inlined_call_operand.vmem [shape: f32[16,128], index: 0, kind: input, shape index: {}]
  %s1 = inlined_call_operand.vmem [shape: bf16[128,256], index: 1, kind: input, shape index: {}]
  %s2 = inlined_call_operand.vmem [shape: f32[1,256], index: 2, kind: input, shape index: {}]
  %s3 = inlined_call_operand.hbm [shape: bf16[256,768], index: 3, kind: input, shape index: {}]
  %s4 = inlined_call_operand.hbm [shape: f32[1,768], index: 4, kind: input, shape index: {}]
  %s5 = inlined_call_operand.hbm [shape: bf16[256,256], index: 5, kind: input, shape index: {}]
  %s6 = inlined_call_operand.vmem [shape: bf16[256,32], index: 6, kind: input, shape index: {}]
  %s7 = inlined_call_operand.vmem [shape: f32[1,32], index: 7, kind: input, shape index: {}]
  %s8 = inlined_call_operand.vmem [shape: bf16[32,32], index: 8, kind: input, shape index: {}]
  %s9 = inlined_call_operand.vmem [shape: f32[1,32], index: 9, kind: input, shape index: {}]
  %s10 = inlined_call_operand.vmem [shape: bf16[32,32], index: 10, kind: input, shape index: {}]
  %s11 = inlined_call_operand.vmem [shape: f32[1,32], index: 11, kind: input, shape index: {}]
  %s12 = inlined_call_operand.vmem [shape: f32[1,32], index: 12, kind: input, shape index: {}]
  %s13 = inlined_call_operand.vmem [shape: f32[1,32], index: 13, kind: input, shape index: {}]
  %s14 = inlined_call_operand.vmem [shape: f32[1,32], index: 14, kind: input, shape index: {}]
  %s15 = inlined_call_operand.vmem [shape: f32[1,32], index: 15, kind: input, shape index: {}]
  %s16 = inlined_call_operand.hbm [shape: f32[16,32], index: 16, kind: output, shape index: {}]
  %s17 = sld [smem:[#allocation0]]
  $region86: #{tpu_custom_call.1} parent=0
    _
  %s19 = ssub.s32 1, %s17
  %s20 = scalar_select 0, %s19, %s17
  $region1: #{tpu_custom_call.1} parent=0
    #allocation2 [shape = 'u8[393216]{0}', space=vmem, size = 0x60000, scoped, tag = 'input window, operand 3, single buffered']
    #allocation3 [shape = 's32[1]{0}', space=sflag, size = 0x4, scoped, tag = 'scoped memory for tpu_custom_call.1']
    #allocation4 [shape = 's32[1]{0}', space=sflag, size = 0x4, scoped, tag = 'scoped memory for tpu_custom_call.1']
    #allocation5 [shape = 'u8[3072]{0}', space=vmem, size = 0xc00, scoped, tag = 'input window, operand 4, single buffered']
    #allocation6 [shape = 's32[1]{0}', space=sflag, size = 0x4, scoped, tag = 'scoped memory for tpu_custom_call.1']
    #allocation7 [shape = 'u8[131072]{0}', space=vmem, size = 0x20000, scoped, tag = 'input window, operand 5, single buffered']
    #allocation8 [shape = 'u8[8192]{0}', space=vmem, size = 0x2000, scoped, tag = 'output window, operand 0, single buffered']
    %21 = vsyncpa [#allocation3], 0
    %22 = vsyncpa [#allocation6], 0
    %23 = vsyncpa [#allocation4], 0
    // Predicated region
    $region2: #{tpu_custom_call.1} parent=1 // pred_check
      _
    $region3: #{tpu_custom_call.1} parent=1 // pred_check_branch
      %25 = sbr.rel (0) target = $region5
    $region4: #{tpu_custom_call.1} parent=1 // pred_region
      _
    $region5: #{tpu_custom_call.1} parent=1 // pred_fallthru
      _
    // Predicated region
    $region6: #{tpu_custom_call.1} parent=1 // pred_check
      _
    $region7: #{tpu_custom_call.1} parent=1 // pred_check_branch
      %27 = sbr.rel (0) target = $region9
    $region8: #{tpu_custom_call.1} parent=1 // pred_region
      _
    $region9: #{tpu_custom_call.1} parent=1 // pred_fallthru
      _
    // Predicated region
    $region10: #{tpu_custom_call.1} parent=1 // pred_check
      _
    $region11: #{tpu_custom_call.1} parent=1 // pred_check_branch
      %29 = sbr.rel (0) target = $region13
    $region12: #{tpu_custom_call.1} parent=1 // pred_region
      _
    $region13: #{tpu_custom_call.1} parent=1 // pred_fallthru
      _
    // Predicated region
    $region14: #{tpu_custom_call.1} parent=1 // pred_check
      _
    $region15: #{tpu_custom_call.1} parent=1 // pred_check_branch
      %31 = sbr.rel (0) target = $region17
    $region16: #{tpu_custom_call.1} parent=1 // pred_region
      %s33 = ssub.s32 12288, 12288
      %34 = vsyncadd [#allocation3], %s33
      %s35 = sshll.u32 [#allocation2], 4
      %s36 = int_to_ptr.vmem [resolvable:$true] %s35
      %41 = dma.hbm_to_vmem [thread:$0]  %s3, 12288, %s36, [#allocation3], 384, 384, 24
    $region17: #{tpu_custom_call.1} parent=1 // pred_fallthru
      _
    // Predicated region
    $region18: #{tpu_custom_call.1} parent=1 // pred_check
      _
    $region19: #{tpu_custom_call.1} parent=1 // pred_check_branch
      %43 = sbr.rel (0) target = $region21
    $region20: #{tpu_custom_call.1} parent=1 // pred_region
      %s45 = ssub.s32 96, 96
      %46 = vsyncadd [#allocation6], %s45
      %s48 = sshll.u32 [#allocation5], 4
      %s49 = int_to_ptr.vmem [resolvable:$true] %s48
      %51 = dma.hbm_to_vmem [thread:$0]  %s4, 96, %s49, [#allocation6]
    $region21: #{tpu_custom_call.1} parent=1 // pred_fallthru
      _
    // Predicated region
    $region22: #{tpu_custom_call.1} parent=1 // pred_check
      _
    $region23: #{tpu_custom_call.1} parent=1 // pred_check_branch
      %53 = sbr.rel (0) target = $region25
    $region24: #{tpu_custom_call.1} parent=1 // pred_region
      %s55 = ssub.s32 4096, 4096
      %56 = vsyncadd [#allocation6], %s55
      %s57 = sshll.u32 [#allocation7], 4
      %s58 = int_to_ptr.vmem [resolvable:$true] %s57
      %63 = dma.hbm_to_vmem [thread:$0]  %s5, 4096, %s58, [#allocation6], 128, 128, 8
    $region25: #{tpu_custom_call.1} parent=1 // pred_fallthru
      _
    // Predicated region
    $region26: #{tpu_custom_call.1} parent=1 // pred_check
      _
    $region27: #{tpu_custom_call.1} parent=1 // pred_check_branch
      %65 = sbr.rel (0) target = $region29
    $region28: #{tpu_custom_call.1} parent=1 // pred_region
      _
    $region29: #{tpu_custom_call.1} parent=1 // pred_fallthru
      _
    // Predicated region
    $region30: #{tpu_custom_call.1} parent=1 // pred_check
      _
    $region31: #{tpu_custom_call.1} parent=1 // pred_check_branch
      %67 = sbr.rel (0) target = $region33
    $region32: #{tpu_custom_call.1} parent=1 // pred_region
      _
    $region33: #{tpu_custom_call.1} parent=1 // pred_fallthru
      _
    // Predicated region
    $region34: #{tpu_custom_call.1} parent=1 // pred_check
      _
    $region35: #{tpu_custom_call.1} parent=1 // pred_check_branch
      %69 = sbr.rel (0) target = $region37
    $region36: #{tpu_custom_call.1} parent=1 // pred_region
      _
    $region37: #{tpu_custom_call.1} parent=1 // pred_fallthru
      _
    // Predicated region
    $region38: #{tpu_custom_call.1} parent=1 // pred_check
      _
    $region39: #{tpu_custom_call.1} parent=1 // pred_check_branch
      %71 = sbr.rel (0) target = $region41
    $region40: #{tpu_custom_call.1} parent=1 // pred_region
      _
    $region41: #{tpu_custom_call.1} parent=1 // pred_fallthru
      _
    // Predicated region
    $region42: #{tpu_custom_call.1} parent=1 // pred_check
      _
    $region43: #{tpu_custom_call.1} parent=1 // pred_check_branch
      %73 = sbr.rel (0) target = $region45
    $region44: #{tpu_custom_call.1} parent=1 // pred_region
      _
    $region45: #{tpu_custom_call.1} parent=1 // pred_fallthru
      _
    // Predicated region
    $region46: #{tpu_custom_call.1} parent=1 // pred_check
      _
    $region47: #{tpu_custom_call.1} parent=1 // pred_check_branch
      %75 = sbr.rel (0) target = $region49
    $region48: #{tpu_custom_call.1} parent=1 // pred_region
      _
    $region49: #{tpu_custom_call.1} parent=1 // pred_fallthru
      _
    // Predicated region
    $region50: #{tpu_custom_call.1} parent=1 // pred_check
      _
    $region51: #{tpu_custom_call.1} parent=1 // pred_check_branch
      %77 = sbr.rel (0) target = $region53
    $region52: #{tpu_custom_call.1} parent=1 // pred_region
      _
    $region53: #{tpu_custom_call.1} parent=1 // pred_fallthru
      _
    // Predicated region
    $region54: #{tpu_custom_call.1} parent=1 // pred_check
      _
    $region55: #{tpu_custom_call.1} parent=1 // pred_check_branch
      %79 = sbr.rel (0) target = $region57
    $region56: #{tpu_custom_call.1} parent=1 // pred_region
      _
    $region57: #{tpu_custom_call.1} parent=1 // pred_fallthru
      _
    // Predicated region
    $region58: #{tpu_custom_call.1} parent=1 // pred_check
      _
    $region59: #{tpu_custom_call.1} parent=1 // pred_check_branch
      %81 = sbr.rel (0) target = $region61
    $region60: #{tpu_custom_call.1} parent=1 // pred_region
      _
    $region61: #{tpu_custom_call.1} parent=1 // pred_fallthru
      _
    // Predicated region
    $region62: #{tpu_custom_call.1} parent=1 // pred_check
      _
    $region63: #{tpu_custom_call.1} parent=1 // pred_check_branch
      %83 = sbr.rel (0) target = $region65
    $region64: #{tpu_custom_call.1} parent=1 // pred_region
      _
    $region65: #{tpu_custom_call.1} parent=1 // pred_fallthru
      _
    // Predicated region
    $region66: #{tpu_custom_call.1} parent=1 // pred_check
      _
    $region67: #{tpu_custom_call.1} parent=1 // pred_check_branch
      %85 = sbr.rel (0) target = $region69
    $region68: #{tpu_custom_call.1} parent=1 // pred_region
      %86 = dma.done [#allocation3], 12288
    $region69: #{tpu_custom_call.1} parent=1 // pred_fallthru
      _
    // Predicated region
    $region70: #{tpu_custom_call.1} parent=1 // pred_check
      _
    $region71: #{tpu_custom_call.1} parent=1 // pred_check_branch
      %88 = sbr.rel (0) target = $region73
    $region72: #{tpu_custom_call.1} parent=1 // pred_region
      %89 = dma.done [#allocation6], 96
    $region73: #{tpu_custom_call.1} parent=1 // pred_fallthru
      _
    // Predicated region
    $region74: #{tpu_custom_call.1} parent=1 // pred_check
      _
    $region75: #{tpu_custom_call.1} parent=1 // pred_check_branch
      %91 = sbr.rel (0) target = $region77
    $region76: #{tpu_custom_call.1} parent=1 // pred_region
      %92 = dma.done [#allocation6], 4096
    $region77: #{tpu_custom_call.1} parent=1 // pred_fallthru
      _
    %v94 = vld [vmem:[%s0] sm:$0xff]
    %v95 = vld [vmem:[%s0 + $0x8] sm:$0xff]
    %v96 = vpack.c.bf16 %v95, %v94
    %v97 = vld [vmem:[%s1] sm:$0xff]
    %v98 = vld [vmem:[%s1 + $0x8] sm:$0xff]
    %v99 = vld [vmem:[%s1 + $0x10] sm:$0xff]
    %v100 = vld [vmem:[%s1 + $0x18] sm:$0xff]
    %v101 = vld [vmem:[%s1 + $0x20] sm:$0xff]
    %v102 = vld [vmem:[%s1 + $0x28] sm:$0xff]
    %v103 = vld [vmem:[%s1 + $0x30] sm:$0xff]
    %v104 = vld [vmem:[%s1 + $0x38] sm:$0xff]
    %v105 = vld [vmem:[%s1 + $0x40] sm:$0xff]
    %v106 = vld [vmem:[%s1 + $0x48] sm:$0xff]
    %v107 = vld [vmem:[%s1 + $0x50] sm:$0xff]
    %v108 = vld [vmem:[%s1 + $0x58] sm:$0xff]
    %v109 = vld [vmem:[%s1 + $0x60] sm:$0xff]
    %v110 = vld [vmem:[%s1 + $0x68] sm:$0xff]
    %v111 = vld [vmem:[%s1 + $0x70] sm:$0xff]
    %v112 = vld [vmem:[%s1 + $0x78] sm:$0xff]
    %v113 = vld [vmem:[%s2] sm:$0x3]
    %v115 = vlaneseq
    %v116 = vshrl.u32 %v115, 7
    %v117 = vsub.s32 0, %v116
    %v118 = vrot.slane %v113, %v117
    %v119 = vlaneseq
    %v120 = vshrl.u32 %v119, 7
    %v121 = vsub.s32 1, %v120
    %v122 = vrot.slane %v113, %v121
    %v141 = vunpack.c.l.b16 %v97
    %v142 = vunpack.c.h.b16 %v97
    %v143 = vunpack.c.l.b16 %v98
    %v144 = vunpack.c.h.b16 %v98
    %v145 = vunpack.c.l.b16 %v99
    %v146 = vunpack.c.h.b16 %v99
    %v147 = vunpack.c.l.b16 %v100
    %v148 = vunpack.c.h.b16 %v100
    %v149 = vunpack.c.l.b16 %v101
    %v150 = vunpack.c.h.b16 %v101
    %v151 = vunpack.c.l.b16 %v102
    %v152 = vunpack.c.h.b16 %v102
    %v153 = vunpack.c.l.b16 %v103
    %v154 = vunpack.c.h.b16 %v103
    %v155 = vunpack.c.l.b16 %v104
    %v156 = vunpack.c.h.b16 %v104
    %v157 = vunpack.c.l.b16 %v105
    %v158 = vunpack.c.h.b16 %v105
    %v159 = vunpack.c.l.b16 %v106
    %v160 = vunpack.c.h.b16 %v106
    %v161 = vunpack.c.l.b16 %v107
    %v162 = vunpack.c.h.b16 %v107
    %v163 = vunpack.c.l.b16 %v108
    %v164 = vunpack.c.h.b16 %v108
    %v165 = vunpack.c.l.b16 %v109
    %v166 = vunpack.c.h.b16 %v109
    %v167 = vunpack.c.l.b16 %v110
    %v168 = vunpack.c.h.b16 %v110
    %v169 = vunpack.c.l.b16 %v111
    %v170 = vunpack.c.h.b16 %v111
    %v171 = vunpack.c.l.b16 %v112
    %v172 = vunpack.c.h.b16 %v112
    %v173 = vpack.c.b16 %v143, %v141
    %v174 = vpack.c.b16 %v144, %v142
    %v175 = vpack.c.b16 %v147, %v145
    %v176 = vpack.c.b16 %v148, %v146
    %v177 = vpack.c.b16 %v151, %v149
    %v178 = vpack.c.b16 %v152, %v150
    %v179 = vpack.c.b16 %v155, %v153
    %v180 = vpack.c.b16 %v156, %v154
    %v181 = vpack.c.b16 %v159, %v157
    %v182 = vpack.c.b16 %v160, %v158
    %v183 = vpack.c.b16 %v163, %v161
    %v184 = vpack.c.b16 %v164, %v162
    %v185 = vpack.c.b16 %v167, %v165
    %v186 = vpack.c.b16 %v168, %v166
    %v187 = vpack.c.b16 %v171, %v169
    %v188 = vpack.c.b16 %v172, %v170
    %205 = vmatprep.subr.bf16.mxu0 %v174
    %206 = vmatpush1.bf16.msra.mxu0 %v173
    %207 = vmatprep.subr.bf16.mxu0 %v176
    %208 = vmatpush1.bf16.msra.mxu0 %v175
    %209 = vmatprep.subr.bf16.mxu0 %v178
    %210 = vmatpush1.bf16.msra.mxu0 %v177
    %211 = vmatprep.subr.bf16.mxu0 %v180
    %212 = vmatpush1.bf16.msra.mxu0 %v179
    %213 = vmatprep.subr.bf16.mxu0 %v182
    %214 = vmatpush1.bf16.msra.mxu0 %v181
    %215 = vmatprep.subr.bf16.mxu0 %v184
    %216 = vmatpush1.bf16.msra.mxu0 %v183
    %217 = vmatprep.subr.bf16.mxu0 %v186
    %218 = vmatpush1.bf16.msra.mxu0 %v185
    %219 = vmatprep.subr.bf16.mxu0 %v188
    %220 = vmatpush1.bf16.msra.mxu0 %v187
    %221 = vmatprep.subr.bf16.mxu0 0
    %222 = vmatpush1.bf16.msra.mxu0 0
    %223 = vmatprep.subr.bf16.mxu0 0
    %224 = vmatpush1.bf16.msra.mxu0 0
    %225 = vmatprep.subr.bf16.mxu0 0
    %226 = vmatpush1.bf16.msra.mxu0 0
    %227 = vmatprep.subr.bf16.mxu0 0
    %228 = vmatpush1.bf16.msra.mxu0 0
    %229 = vmatprep.subr.bf16.mxu0 0
    %230 = vmatpush1.bf16.msra.mxu0 0
    %231 = vmatprep.subr.bf16.mxu0 0
    %232 = vmatpush1.bf16.msra.mxu0 0
    %233 = vmatprep.subr.bf16.mxu0 0
    %234 = vmatpush1.bf16.msra.mxu0 0
    %235 = vmatprep.subr.bf16.mxu0 0
    %236 = vmatpush1.bf16.msra.mxu0 0
    %237 = vmatprep.mubr.bf16.mxu0 0
    %238 = vmatmul.mubr.bf16.gmra.mrb[0].mxu0 %v96
    %v239 = vpop.f32.mrb[0].mxu0
    %v240 = vadd.f32 %v118, %v239
    %v241 = vpop.f32.mrb[0].mxu0
    %v242 = vadd.f32 %v122, %v241
    %v243 = vpop.f32.mrb[0].mxu0
    %v244 = vadd.f32 %v118, %v243
    %v245 = vpop.f32.mrb[0].mxu0
    %v246 = vadd.f32 %v122, %v245
    %247 = vdwg.mxu0
    %v248 = vpack.c.bf16 %v244, %v240
    %v249 = vpack.c.bf16 %v246, %v242
    %v250 = vld [vmem:[#allocation2] sm:$0xff]
    %v251 = vld [vmem:[#allocation2 + $0x8] sm:$0xff]
    %v252 = vld [vmem:[#allocation2 + $0x10] sm:$0xff]
    %v253 = vld [vmem:[#allocation2 + $0x18] sm:$0xff]
    %v254 = vld [vmem:[#allocation2 + $0x20] sm:$0xff]
    %v255 = vld [vmem:[#allocation2 + $0x28] sm:$0xff]
    %v256 = vld [vmem:[#allocation2 + $0x30] sm:$0xff]
    %v257 = vld [vmem:[#allocation2 + $0x38] sm:$0xff]
    %v258 = vld [vmem:[#allocation2 + $0x40] sm:$0xff]
    %v259 = vld [vmem:[#allocation2 + $0x48] sm:$0xff]
    %v260 = vld [vmem:[#allocation2 + $0x50] sm:$0xff]
    %v261 = vld [vmem:[#allocation2 + $0x58] sm:$0xff]
    %v262 = vld [vmem:[#allocation2 + $0x60] sm:$0xff]
    %v263 = vld [vmem:[#allocation2 + $0x68] sm:$0xff]
    %v264 = vld [vmem:[#allocation2 + $0x70] sm:$0xff]
    %v265 = vld [vmem:[#allocation2 + $0x78] sm:$0xff]
    %v266 = vld [vmem:[#allocation2 + $0x80] sm:$0xff]
    %v267 = vld [vmem:[#allocation2 + $0x88] sm:$0xff]
    %v268 = vld [vmem:[#allocation2 + $0x90] sm:$0xff]
    %v269 = vld [vmem:[#allocation2 + $0x98] sm:$0xff]
    %v270 = vld [vmem:[#allocation2 + $0xa0] sm:$0xff]
    %v271 = vld [vmem:[#allocation2 + $0xa8] sm:$0xff]
    %v272 = vld [vmem:[#allocation2 + $0xb0] sm:$0xff]
    %v273 = vld [vmem:[#allocation2 + $0xb8] sm:$0xff]
    %v274 = vld [vmem:[#allocation2 + $0xc0] sm:$0xff]
    %v275 = vld [vmem:[#allocation2 + $0xc8] sm:$0xff]
    %v276 = vld [vmem:[#allocation2 + $0xd0] sm:$0xff]
    %v277 = vld [vmem:[#allocation2 + $0xd8] sm:$0xff]
    %v278 = vld [vmem:[#allocation2 + $0xe0] sm:$0xff]
    %v279 = vld [vmem:[#allocation2 + $0xe8] sm:$0xff]
    %v280 = vld [vmem:[#allocation2 + $0xf0] sm:$0xff]
    %v281 = vld [vmem:[#allocation2 + $0xf8] sm:$0xff]
    %v282 = vld [vmem:[#allocation2 + $0x100] sm:$0xff]
    %v283 = vld [vmem:[#allocation2 + $0x108] sm:$0xff]
    %v284 = vld [vmem:[#allocation2 + $0x110] sm:$0xff]
    %v285 = vld [vmem:[#allocation2 + $0x118] sm:$0xff]
    %v286 = vld [vmem:[#allocation2 + $0x120] sm:$0xff]
    %v287 = vld [vmem:[#allocation2 + $0x128] sm:$0xff]
    %v288 = vld [vmem:[#allocation2 + $0x130] sm:$0xff]
    %v289 = vld [vmem:[#allocation2 + $0x138] sm:$0xff]
    %v290 = vld [vmem:[#allocation2 + $0x140] sm:$0xff]
    %v291 = vld [vmem:[#allocation2 + $0x148] sm:$0xff]
    %v292 = vld [vmem:[#allocation2 + $0x150] sm:$0xff]
    %v293 = vld [vmem:[#allocation2 + $0x158] sm:$0xff]
    %v294 = vld [vmem:[#allocation2 + $0x160] sm:$0xff]
    %v295 = vld [vmem:[#allocation2 + $0x168] sm:$0xff]
    %v296 = vld [vmem:[#allocation2 + $0x170] sm:$0xff]
    %v297 = vld [vmem:[#allocation2 + $0x178] sm:$0xff]
    %v298 = vld [vmem:[#allocation2 + $0x180] sm:$0xff]
    %v299 = vld [vmem:[#allocation2 + $0x188] sm:$0xff]
    %v300 = vld [vmem:[#allocation2 + $0x190] sm:$0xff]
    %v301 = vld [vmem:[#allocation2 + $0x198] sm:$0xff]
    %v302 = vld [vmem:[#allocation2 + $0x1a0] sm:$0xff]
    %v303 = vld [vmem:[#allocation2 + $0x1a8] sm:$0xff]
    %v304 = vld [vmem:[#allocation2 + $0x1b0] sm:$0xff]
    %v305 = vld [vmem:[#allocation2 + $0x1b8] sm:$0xff]
    %v306 = vld [vmem:[#allocation2 + $0x1c0] sm:$0xff]
    %v307 = vld [vmem:[#allocation2 + $0x1c8] sm:$0xff]
    %v308 = vld [vmem:[#allocation2 + $0x1d0] sm:$0xff]
    %v309 = vld [vmem:[#allocation2 + $0x1d8] sm:$0xff]
    %v310 = vld [vmem:[#allocation2 + $0x1e0] sm:$0xff]
    %v311 = vld [vmem:[#allocation2 + $0x1e8] sm:$0xff]
    %v312 = vld [vmem:[#allocation2 + $0x1f0] sm:$0xff]
    %v313 = vld [vmem:[#allocation2 + $0x1f8] sm:$0xff]
    %v314 = vld [vmem:[#allocation2 + $0x200] sm:$0xff]
    %v315 = vld [vmem:[#allocation2 + $0x208] sm:$0xff]
    %v316 = vld [vmem:[#allocation2 + $0x210] sm:$0xff]
    %v317 = vld [vmem:[#allocation2 + $0x218] sm:$0xff]
    %v318 = vld [vmem:[#allocation2 + $0x220] sm:$0xff]
    %v319 = vld [vmem:[#allocation2 + $0x228] sm:$0xff]
    %v320 = vld [vmem:[#allocation2 + $0x230] sm:$0xff]
    %v321 = vld [vmem:[#allocation2 + $0x238] sm:$0xff]
    %v322 = vld [vmem:[#allocation2 + $0x240] sm:$0xff]
    %v323 = vld [vmem:[#allocation2 + $0x248] sm:$0xff]
    %v324 = vld [vmem:[#allocation2 + $0x250] sm:$0xff]
    %v325 = vld [vmem:[#allocation2 + $0x258] sm:$0xff]
    %v326 = vld [vmem:[#allocation2 + $0x260] sm:$0xff]
    %v327 = vld [vmem:[#allocation2 + $0x268] sm:$0xff]
    %v328 = vld [vmem:[#allocation2 + $0x270] sm:$0xff]
    %v329 = vld [vmem:[#allocation2 + $0x278] sm:$0xff]
    %v330 = vld [vmem:[#allocation2 + $0x280] sm:$0xff]
    %v331 = vld [vmem:[#allocation2 + $0x288] sm:$0xff]
    %v332 = vld [vmem:[#allocation2 + $0x290] sm:$0xff]
    %v333 = vld [vmem:[#allocation2 + $0x298] sm:$0xff]
    %v334 = vld [vmem:[#allocation2 + $0x2a0] sm:$0xff]
    %v335 = vld [vmem:[#allocation2 + $0x2a8] sm:$0xff]
    %v336 = vld [vmem:[#allocation2 + $0x2b0] sm:$0xff]
    %v337 = vld [vmem:[#allocation2 + $0x2b8] sm:$0xff]
    %v338 = vld [vmem:[#allocation2 + $0x2c0] sm:$0xff]
    %v339 = vld [vmem:[#allocation2 + $0x2c8] sm:$0xff]
    %v340 = vld [vmem:[#allocation2 + $0x2d0] sm:$0xff]
    %v341 = vld [vmem:[#allocation2 + $0x2d8] sm:$0xff]
    %v342 = vld [vmem:[#allocation2 + $0x2e0] sm:$0xff]
    %v343 = vld [vmem:[#allocation2 + $0x2e8] sm:$0xff]
    %v344 = vld [vmem:[#allocation2 + $0x2f0] sm:$0xff]
    %v345 = vld [vmem:[#allocation2 + $0x2f8] sm:$0xff]
    %v346 = vld [vmem:[#allocation5] sm:$0x3f]
    %v348 = vlaneseq
    %v349 = vshrl.u32 %v348, 7
    %v350 = vsub.s32 0, %v349
    %v351 = vrot.slane %v346, %v350
    %v352 = vlaneseq
    %v353 = vshrl.u32 %v352, 7
    %v354 = vsub.s32 1, %v353
    %v355 = vrot.slane %v346, %v354
    %v356 = vlaneseq
    %v357 = vshrl.u32 %v356, 7
    %v358 = vsub.s32 2, %v357
    %v359 = vrot.slane %v346, %v358
    %v360 = vlaneseq
    %v361 = vshrl.u32 %v360, 7
    %v362 = vsub.s32 3, %v361
    %v363 = vrot.slane %v346, %v362
    %v364 = vlaneseq
    %v365 = vshrl.u32 %v364, 7
    %v366 = vsub.s32 4, %v365
    %v367 = vrot.slane %v346, %v366
    %v368 = vlaneseq
    %v369 = vshrl.u32 %v368, 7
    %v370 = vsub.s32 5, %v369
    %v371 = vrot.slane %v346, %v370
    %v474 = vunpack.c.l.b16 %v250
    %v475 = vunpack.c.h.b16 %v250
    %v476 = vunpack.c.l.b16 %v251
    %v477 = vunpack.c.h.b16 %v251
    %v478 = vunpack.c.l.b16 %v252
    %v479 = vunpack.c.h.b16 %v252
    %v480 = vunpack.c.l.b16 %v253
    %v481 = vunpack.c.h.b16 %v253
    %v482 = vunpack.c.l.b16 %v254
    %v483 = vunpack.c.h.b16 %v254
    %v484 = vunpack.c.l.b16 %v255
    %v485 = vunpack.c.h.b16 %v255
    %v486 = vunpack.c.l.b16 %v256
    %v487 = vunpack.c.h.b16 %v256
    %v488 = vunpack.c.l.b16 %v257
    %v489 = vunpack.c.h.b16 %v257
    %v490 = vunpack.c.l.b16 %v258
    %v491 = vunpack.c.h.b16 %v258
    %v492 = vunpack.c.l.b16 %v259
    %v493 = vunpack.c.h.b16 %v259
    %v494 = vunpack.c.l.b16 %v260
    %v495 = vunpack.c.h.b16 %v260
    %v496 = vunpack.c.l.b16 %v261
    %v497 = vunpack.c.h.b16 %v261
    %v498 = vunpack.c.l.b16 %v262
    %v499 = vunpack.c.h.b16 %v262
    %v500 = vunpack.c.l.b16 %v263
    %v501 = vunpack.c.h.b16 %v263
    %v502 = vunpack.c.l.b16 %v264
    %v503 = vunpack.c.h.b16 %v264
    %v504 = vunpack.c.l.b16 %v265
    %v505 = vunpack.c.h.b16 %v265
    %v506 = vunpack.c.l.b16 %v266
    %v507 = vunpack.c.h.b16 %v266
    %v508 = vunpack.c.l.b16 %v267
    %v509 = vunpack.c.h.b16 %v267
    %v510 = vunpack.c.l.b16 %v268
    %v511 = vunpack.c.h.b16 %v268
    %v512 = vunpack.c.l.b16 %v269
    %v513 = vunpack.c.h.b16 %v269
    %v514 = vunpack.c.l.b16 %v270
    %v515 = vunpack.c.h.b16 %v270
    %v516 = vunpack.c.l.b16 %v271
    %v517 = vunpack.c.h.b16 %v271
    %v518 = vunpack.c.l.b16 %v272
    %v519 = vunpack.c.h.b16 %v272
    %v520 = vunpack.c.l.b16 %v273
    %v521 = vunpack.c.h.b16 %v273
    %v522 = vunpack.c.l.b16 %v274
    %v523 = vunpack.c.h.b16 %v274
    %v524 = vunpack.c.l.b16 %v275
    %v525 = vunpack.c.h.b16 %v275
    %v526 = vunpack.c.l.b16 %v276
    %v527 = vunpack.c.h.b16 %v276
    %v528 = vunpack.c.l.b16 %v277
    %v529 = vunpack.c.h.b16 %v277
    %v530 = vunpack.c.l.b16 %v278
    %v531 = vunpack.c.h.b16 %v278
    %v532 = vunpack.c.l.b16 %v279
    %v533 = vunpack.c.h.b16 %v279
    %v534 = vunpack.c.l.b16 %v280
    %v535 = vunpack.c.h.b16 %v280
    %v536 = vunpack.c.l.b16 %v281
    %v537 = vunpack.c.h.b16 %v281
    %v538 = vunpack.c.l.b16 %v282
    %v539 = vunpack.c.h.b16 %v282
    %v540 = vunpack.c.l.b16 %v283
    %v541 = vunpack.c.h.b16 %v283
    %v542 = vunpack.c.l.b16 %v284
    %v543 = vunpack.c.h.b16 %v284
    %v544 = vunpack.c.l.b16 %v285
    %v545 = vunpack.c.h.b16 %v285
    %v546 = vunpack.c.l.b16 %v286
    %v547 = vunpack.c.h.b16 %v286
    %v548 = vunpack.c.l.b16 %v287
    %v549 = vunpack.c.h.b16 %v287
    %v550 = vunpack.c.l.b16 %v288
    %v551 = vunpack.c.h.b16 %v288
    %v552 = vunpack.c.l.b16 %v289
    %v553 = vunpack.c.h.b16 %v289
    %v554 = vunpack.c.l.b16 %v290
    %v555 = vunpack.c.h.b16 %v290
    %v556 = vunpack.c.l.b16 %v291
    %v557 = vunpack.c.h.b16 %v291
    %v558 = vunpack.c.l.b16 %v292
    %v559 = vunpack.c.h.b16 %v292
    %v560 = vunpack.c.l.b16 %v293
    %v561 = vunpack.c.h.b16 %v293
    %v562 = vunpack.c.l.b16 %v294
    %v563 = vunpack.c.h.b16 %v294
    %v564 = vunpack.c.l.b16 %v295
    %v565 = vunpack.c.h.b16 %v295
    %v566 = vunpack.c.l.b16 %v296
    %v567 = vunpack.c.h.b16 %v296
    %v568 = vunpack.c.l.b16 %v297
    %v569 = vunpack.c.h.b16 %v297
    %v570 = vunpack.c.l.b16 %v298
    %v571 = vunpack.c.h.b16 %v298
    %v572 = vunpack.c.l.b16 %v299
    %v573 = vunpack.c.h.b16 %v299
    %v574 = vunpack.c.l.b16 %v300
    %v575 = vunpack.c.h.b16 %v300
    %v576 = vunpack.c.l.b16 %v301
    %v577 = vunpack.c.h.b16 %v301
    %v578 = vunpack.c.l.b16 %v302
    %v579 = vunpack.c.h.b16 %v302
    %v580 = vunpack.c.l.b16 %v303
    %v581 = vunpack.c.h.b16 %v303
    %v582 = vunpack.c.l.b16 %v304
    %v583 = vunpack.c.h.b16 %v304
    %v584 = vunpack.c.l.b16 %v305
    %v585 = vunpack.c.h.b16 %v305
    %v586 = vunpack.c.l.b16 %v306
    %v587 = vunpack.c.h.b16 %v306
    %v588 = vunpack.c.l.b16 %v307
    %v589 = vunpack.c.h.b16 %v307
    %v590 = vunpack.c.l.b16 %v308
    %v591 = vunpack.c.h.b16 %v308
    %v592 = vunpack.c.l.b16 %v309
    %v593 = vunpack.c.h.b16 %v309
    %v594 = vunpack.c.l.b16 %v310
    %v595 = vunpack.c.h.b16 %v310
    %v596 = vunpack.c.l.b16 %v311
    %v597 = vunpack.c.h.b16 %v311
    %v598 = vunpack.c.l.b16 %v312
    %v599 = vunpack.c.h.b16 %v312
    %v600 = vunpack.c.l.b16 %v313
    %v601 = vunpack.c.h.b16 %v313
    %v602 = vunpack.c.l.b16 %v314
    %v603 = vunpack.c.h.b16 %v314
    %v604 = vunpack.c.l.b16 %v315
    %v605 = vunpack.c.h.b16 %v315
    %v606 = vunpack.c.l.b16 %v316
    %v607 = vunpack.c.h.b16 %v316
    %v608 = vunpack.c.l.b16 %v317
    %v609 = vunpack.c.h.b16 %v317
    %v610 = vunpack.c.l.b16 %v318
    %v611 = vunpack.c.h.b16 %v318
    %v612 = vunpack.c.l.b16 %v319
    %v613 = vunpack.c.h.b16 %v319
    %v614 = vunpack.c.l.b16 %v320
    %v615 = vunpack.c.h.b16 %v320
    %v616 = vunpack.c.l.b16 %v321
    %v617 = vunpack.c.h.b16 %v321
    %v618 = vunpack.c.l.b16 %v322
    %v619 = vunpack.c.h.b16 %v322
    %v620 = vunpack.c.l.b16 %v323
    %v621 = vunpack.c.h.b16 %v323
    %v622 = vunpack.c.l.b16 %v324
    %v623 = vunpack.c.h.b16 %v324
    %v624 = vunpack.c.l.b16 %v325
    %v625 = vunpack.c.h.b16 %v325
    %v626 = vunpack.c.l.b16 %v326
    %v627 = vunpack.c.h.b16 %v326
    %v628 = vunpack.c.l.b16 %v327
    %v629 = vunpack.c.h.b16 %v327
    %v630 = vunpack.c.l.b16 %v328
    %v631 = vunpack.c.h.b16 %v328
    %v632 = vunpack.c.l.b16 %v329
    %v633 = vunpack.c.h.b16 %v329
    %v634 = vunpack.c.l.b16 %v330
    %v635 = vunpack.c.h.b16 %v330
    %v636 = vunpack.c.l.b16 %v331
    %v637 = vunpack.c.h.b16 %v331
    %v638 = vunpack.c.l.b16 %v332
    %v639 = vunpack.c.h.b16 %v332
    %v640 = vunpack.c.l.b16 %v333
    %v641 = vunpack.c.h.b16 %v333
    %v642 = vunpack.c.l.b16 %v334
    %v643 = vunpack.c.h.b16 %v334
    %v644 = vunpack.c.l.b16 %v335
    %v645 = vunpack.c.h.b16 %v335
    %v646 = vunpack.c.l.b16 %v336
    %v647 = vunpack.c.h.b16 %v336
    %v648 = vunpack.c.l.b16 %v337
    %v649 = vunpack.c.h.b16 %v337
    %v650 = vunpack.c.l.b16 %v338
    %v651 = vunpack.c.h.b16 %v338
    %v652 = vunpack.c.l.b16 %v339
    %v653 = vunpack.c.h.b16 %v339
    %v654 = vunpack.c.l.b16 %v340
    %v655 = vunpack.c.h.b16 %v340
    %v656 = vunpack.c.l.b16 %v341
    %v657 = vunpack.c.h.b16 %v341
    %v658 = vunpack.c.l.b16 %v342
    %v659 = vunpack.c.h.b16 %v342
    %v660 = vunpack.c.l.b16 %v343
    %v661 = vunpack.c.h.b16 %v343
    %v662 = vunpack.c.l.b16 %v344
    %v663 = vunpack.c.h.b16 %v344
    %v664 = vunpack.c.l.b16 %v345
    %v665 = vunpack.c.h.b16 %v345
    %v666 = vpack.c.b16 %v480, %v474
    %v667 = vpack.c.b16 %v481, %v475
    %v668 = vpack.c.b16 %v482, %v476
    %v669 = vpack.c.b16 %v483, %v477
    %v670 = vpack.c.b16 %v484, %v478
    %v671 = vpack.c.b16 %v485, %v479
    %v672 = vpack.c.b16 %v492, %v486
    %v673 = vpack.c.b16 %v493, %v487
    %v674 = vpack.c.b16 %v494, %v488
    %v675 = vpack.c.b16 %v495, %v489
    %v676 = vpack.c.b16 %v496, %v490
    %v677 = vpack.c.b16 %v497, %v491
    %v678 = vpack.c.b16 %v504, %v498
    %v679 = vpack.c.b16 %v505, %v499
    %v680 = vpack.c.b16 %v506, %v500
    %v681 = vpack.c.b16 %v507, %v501
    %v682 = vpack.c.b16 %v508, %v502
    %v683 = vpack.c.b16 %v509, %v503
    %v684 = vpack.c.b16 %v516, %v510
    %v685 = vpack.c.b16 %v517, %v511
    %v686 = vpack.c.b16 %v518, %v512
    %v687 = vpack.c.b16 %v519, %v513
    %v688 = vpack.c.b16 %v520, %v514
    %v689 = vpack.c.b16 %v521, %v515
    %v690 = vpack.c.b16 %v528, %v522
    %v691 = vpack.c.b16 %v529, %v523
    %v692 = vpack.c.b16 %v530, %v524
    %v693 = vpack.c.b16 %v531, %v525
    %v694 = vpack.c.b16 %v532, %v526
    %v695 = vpack.c.b16 %v533, %v527
    %v696 = vpack.c.b16 %v540, %v534
    %v697 = vpack.c.b16 %v541, %v535
    %v698 = vpack.c.b16 %v542, %v536
    %v699 = vpack.c.b16 %v543, %v537
    %v700 = vpack.c.b16 %v544, %v538
    %v701 = vpack.c.b16 %v545, %v539
    %v702 = vpack.c.b16 %v552, %v546
    %v703 = vpack.c.b16 %v553, %v547
    %v704 = vpack.c.b16 %v554, %v548
    %v705 = vpack.c.b16 %v555, %v549
    %v706 = vpack.c.b16 %v556, %v550
    %v707 = vpack.c.b16 %v557, %v551
    %v708 = vpack.c.b16 %v564, %v558
    %v709 = vpack.c.b16 %v565, %v559
    %v710 = vpack.c.b16 %v566, %v560
    %v711 = vpack.c.b16 %v567, %v561
    %v712 = vpack.c.b16 %v568, %v562
    %v713 = vpack.c.b16 %v569, %v563
    %v714 = vpack.c.b16 %v576, %v570
    %v715 = vpack.c.b16 %v577, %v571
    %v716 = vpack.c.b16 %v578, %v572
    %v717 = vpack.c.b16 %v579, %v573
    %v718 = vpack.c.b16 %v580, %v574
    %v719 = vpack.c.b16 %v581, %v575
    %v720 = vpack.c.b16 %v588, %v582
    %v721 = vpack.c.b16 %v589, %v583
    %v722 = vpack.c.b16 %v590, %v584
    %v723 = vpack.c.b16 %v591, %v585
    %v724 = vpack.c.b16 %v592, %v586
    %v725 = vpack.c.b16 %v593, %v587
    %v726 = vpack.c.b16 %v600, %v594
    %v727 = vpack.c.b16 %v601, %v595
    %v728 = vpack.c.b16 %v602, %v596
    %v729 = vpack.c.b16 %v603, %v597
    %v730 = vpack.c.b16 %v604, %v598
    %v731 = vpack.c.b16 %v605, %v599
    %v732 = vpack.c.b16 %v612, %v606
    %v733 = vpack.c.b16 %v613, %v607
    %v734 = vpack.c.b16 %v614, %v608
    %v735 = vpack.c.b16 %v615, %v609
    %v736 = vpack.c.b16 %v616, %v610
    %v737 = vpack.c.b16 %v617, %v611
    %v738 = vpack.c.b16 %v624, %v618
    %v739 = vpack.c.b16 %v625, %v619
    %v740 = vpack.c.b16 %v626, %v620
    %v741 = vpack.c.b16 %v627, %v621
    %v742 = vpack.c.b16 %v628, %v622
    %v743 = vpack.c.b16 %v629, %v623
    %v744 = vpack.c.b16 %v636, %v630
    %v745 = vpack.c.b16 %v637, %v631
    %v746 = vpack.c.b16 %v638, %v632
    %v747 = vpack.c.b16 %v639, %v633
    %v748 = vpack.c.b16 %v640, %v634
    %v749 = vpack.c.b16 %v641, %v635
    %v750 = vpack.c.b16 %v648, %v642
    %v751 = vpack.c.b16 %v649, %v643
    %v752 = vpack.c.b16 %v650, %v644
    %v753 = vpack.c.b16 %v651, %v645
    %v754 = vpack.c.b16 %v652, %v646
    %v755 = vpack.c.b16 %v653, %v647
    %v756 = vpack.c.b16 %v660, %v654
    %v757 = vpack.c.b16 %v661, %v655
    %v758 = vpack.c.b16 %v662, %v656
    %v759 = vpack.c.b16 %v663, %v657
    %v760 = vpack.c.b16 %v664, %v658
    %v761 = vpack.c.b16 %v665, %v659
    %858 = vmatprep.subr.bf16.mxu0 %v667
    %859 = vmatpush1.bf16.msra.mxu0 %v666
    %860 = vmatprep.subr.bf16.mxu0 %v673
    %861 = vmatpush1.bf16.msra.mxu0 %v672
    %862 = vmatprep.subr.bf16.mxu0 %v679
    %863 = vmatpush1.bf16.msra.mxu0 %v678
    %864 = vmatprep.subr.bf16.mxu0 %v685
    %865 = vmatpush1.bf16.msra.mxu0 %v684
    %866 = vmatprep.subr.bf16.mxu0 %v691
    %867 = vmatpush1.bf16.msra.mxu0 %v690
    %868 = vmatprep.subr.bf16.mxu0 %v697
    %869 = vmatpush1.bf16.msra.mxu0 %v696
    %870 = vmatprep.subr.bf16.mxu0 %v703
    %871 = vmatpush1.bf16.msra.mxu0 %v702
    %872 = vmatprep.subr.bf16.mxu0 %v709
    %873 = vmatpush1.bf16.msra.mxu0 %v708
    %874 = vmatprep.subr.bf16.mxu0 %v715
    %875 = vmatpush1.bf16.msra.mxu0 %v714
    %876 = vmatprep.subr.bf16.mxu0 %v721
    %877 = vmatpush1.bf16.msra.mxu0 %v720
    %878 = vmatprep.subr.bf16.mxu0 %v727
    %879 = vmatpush1.bf16.msra.mxu0 %v726
    %880 = vmatprep.subr.bf16.mxu0 %v733
    %881 = vmatpush1.bf16.msra.mxu0 %v732
    %882 = vmatprep.subr.bf16.mxu0 %v739
    %883 = vmatpush1.bf16.msra.mxu0 %v738
    %884 = vmatprep.subr.bf16.mxu0 %v745
    %885 = vmatpush1.bf16.msra.mxu0 %v744
    %886 = vmatprep.subr.bf16.mxu0 %v751
    %887 = vmatpush1.bf16.msra.mxu0 %v750
    %888 = vmatprep.subr.bf16.mxu0 %v757
    %889 = vmatpush1.bf16.msra.mxu0 %v756
    %890 = vmatprep.mubr.bf16.mxu0 %v249
    %891 = vmatmul.mubr.bf16.gmra.mrb[0].mxu0 %v248
    %v892 = vpop.f32.mrb[0].mxu0
    %v893 = vadd.f32 %v351, %v892
    %v894 = vpop.f32.mrb[0].mxu0
    %v895 = vadd.f32 %v355, %v894
    %v896 = vpop.f32.mrb[0].mxu0
    %v897 = vadd.f32 %v351, %v896
    %v898 = vpop.f32.mrb[0].mxu0
    %v899 = vadd.f32 %v355, %v898
    %900 = vdwg.mxu0
    %901 = vmatprep.subr.bf16.mxu0 %v669
    %902 = vmatpush1.bf16.msra.mxu0 %v668
    %903 = vmatprep.subr.bf16.mxu0 %v675
    %904 = vmatpush1.bf16.msra.mxu0 %v674
    %905 = vmatprep.subr.bf16.mxu0 %v681
    %906 = vmatpush1.bf16.msra.mxu0 %v680
    %907 = vmatprep.subr.bf16.mxu0 %v687
    %908 = vmatpush1.bf16.msra.mxu0 %v686
    %909 = vmatprep.subr.bf16.mxu0 %v693
    %910 = vmatpush1.bf16.msra.mxu0 %v692
    %911 = vmatprep.subr.bf16.mxu0 %v699
    %912 = vmatpush1.bf16.msra.mxu0 %v698
    %913 = vmatprep.subr.bf16.mxu0 %v705
    %914 = vmatpush1.bf16.msra.mxu0 %v704
    %915 = vmatprep.subr.bf16.mxu0 %v711
    %916 = vmatpush1.bf16.msra.mxu0 %v710
    %917 = vmatprep.subr.bf16.mxu0 %v717
    %918 = vmatpush1.bf16.msra.mxu0 %v716
    %919 = vmatprep.subr.bf16.mxu0 %v723
    %920 = vmatpush1.bf16.msra.mxu0 %v722
    %921 = vmatprep.subr.bf16.mxu0 %v729
    %922 = vmatpush1.bf16.msra.mxu0 %v728
    %923 = vmatprep.subr.bf16.mxu0 %v735
    %924 = vmatpush1.bf16.msra.mxu0 %v734
    %925 = vmatprep.subr.bf16.mxu0 %v741
    %926 = vmatpush1.bf16.msra.mxu0 %v740
    %927 = vmatprep.subr.bf16.mxu0 %v747
    %928 = vmatpush1.bf16.msra.mxu0 %v746
    %929 = vmatprep.subr.bf16.mxu0 %v753
    %930 = vmatpush1.bf16.msra.mxu0 %v752
    %931 = vmatprep.subr.bf16.mxu0 %v759
    %932 = vmatpush1.bf16.msra.mxu0 %v758
    %933 = vmatprep.mubr.bf16.mxu0 %v249
    %934 = vmatmul.mubr.bf16.gmra.mrb[0].mxu0 %v248
    %v935 = vpop.f32.mrb[0].mxu0
    %v936 = vadd.f32 %v359, %v935
    %v937 = vpop.f32.mrb[0].mxu0
    %v938 = vadd.f32 %v363, %v937
    %v939 = vpop.f32.mrb[0].mxu0
    %v940 = vadd.f32 %v359, %v939
    %v941 = vpop.f32.mrb[0].mxu0
    %v942 = vadd.f32 %v363, %v941
    %943 = vdwg.mxu0
    %944 = vmatprep.subr.bf16.mxu0 %v671
    %945 = vmatpush1.bf16.msra.mxu0 %v670
    %946 = vmatprep.subr.bf16.mxu0 %v677
    %947 = vmatpush1.bf16.msra.mxu0 %v676
    %948 = vmatprep.subr.bf16.mxu0 %v683
    %949 = vmatpush1.bf16.msra.mxu0 %v682
    %950 = vmatprep.subr.bf16.mxu0 %v689
    %951 = vmatpush1.bf16.msra.mxu0 %v688
    %952 = vmatprep.subr.bf16.mxu0 %v695
    %953 = vmatpush1.bf16.msra.mxu0 %v694
    %954 = vmatprep.subr.bf16.mxu0 %v701
    %955 = vmatpush1.bf16.msra.mxu0 %v700
    %956 = vmatprep.subr.bf16.mxu0 %v707
    %957 = vmatpush1.bf16.msra.mxu0 %v706
    %958 = vmatprep.subr.bf16.mxu0 %v713
    %959 = vmatpush1.bf16.msra.mxu0 %v712
    %960 = vmatprep.subr.bf16.mxu0 %v719
    %961 = vmatpush1.bf16.msra.mxu0 %v718
    %962 = vmatprep.subr.bf16.mxu0 %v725
    %963 = vmatpush1.bf16.msra.mxu0 %v724
    %964 = vmatprep.subr.bf16.mxu0 %v731
    %965 = vmatpush1.bf16.msra.mxu0 %v730
    %966 = vmatprep.subr.bf16.mxu0 %v737
    %967 = vmatpush1.bf16.msra.mxu0 %v736
    %968 = vmatprep.subr.bf16.mxu0 %v743
    %969 = vmatpush1.bf16.msra.mxu0 %v742
    %970 = vmatprep.subr.bf16.mxu0 %v749
    %971 = vmatpush1.bf16.msra.mxu0 %v748
    %972 = vmatprep.subr.bf16.mxu0 %v755
    %973 = vmatpush1.bf16.msra.mxu0 %v754
    %974 = vmatprep.subr.bf16.mxu0 %v761
    %975 = vmatpush1.bf16.msra.mxu0 %v760
    %976 = vmatprep.mubr.bf16.mxu0 %v249
    %977 = vmatmul.mubr.bf16.gmra.mrb[0].mxu0 %v248
    %v978 = vpop.f32.mrb[0].mxu0
    %v979 = vadd.f32 %v367, %v978
    %v980 = vpop.f32.mrb[0].mxu0
    %v981 = vadd.f32 %v371, %v980
    %v982 = vpop.f32.mrb[0].mxu0
    %v983 = vadd.f32 %v367, %v982
    %v984 = vpop.f32.mrb[0].mxu0
    %v985 = vadd.f32 %v371, %v984
    %986 = vdwg.mxu0
    %v987 = vmul.f32 %v893, %v936
    %v988 = vmul.f32 %v895, %v938
    %v989 = vmul.f32 %v897, %v940
    %v990 = vmul.f32 %v899, %v942
    %v991 = vpack.c.bf16 %v989, %v987
    %v992 = vpack.c.bf16 %v990, %v988
    %v993 = vld [vmem:[#allocation7] sm:$0xff]
    %v994 = vld [vmem:[#allocation7 + $0x8] sm:$0xff]
    %v995 = vld [vmem:[#allocation7 + $0x10] sm:$0xff]
    %v996 = vld [vmem:[#allocation7 + $0x18] sm:$0xff]
    %v997 = vld [vmem:[#allocation7 + $0x20] sm:$0xff]
    %v998 = vld [vmem:[#allocation7 + $0x28] sm:$0xff]
    %v999 = vld [vmem:[#allocation7 + $0x30] sm:$0xff]
    %v1000 = vld [vmem:[#allocation7 + $0x38] sm:$0xff]
    %v1001 = vld [vmem:[#allocation7 + $0x40] sm:$0xff]
    %v1002 = vld [vmem:[#allocation7 + $0x48] sm:$0xff]
    %v1003 = vld [vmem:[#allocation7 + $0x50] sm:$0xff]
    %v1004 = vld [vmem:[#allocation7 + $0x58] sm:$0xff]
    %v1005 = vld [vmem:[#allocation7 + $0x60] sm:$0xff]
    %v1006 = vld [vmem:[#allocation7 + $0x68] sm:$0xff]
    %v1007 = vld [vmem:[#allocation7 + $0x70] sm:$0xff]
    %v1008 = vld [vmem:[#allocation7 + $0x78] sm:$0xff]
    %v1009 = vld [vmem:[#allocation7 + $0x80] sm:$0xff]
    %v1010 = vld [vmem:[#allocation7 + $0x88] sm:$0xff]
    %v1011 = vld [vmem:[#allocation7 + $0x90] sm:$0xff]
    %v1012 = vld [vmem:[#allocation7 + $0x98] sm:$0xff]
    %v1013 = vld [vmem:[#allocation7 + $0xa0] sm:$0xff]
    %v1014 = vld [vmem:[#allocation7 + $0xa8] sm:$0xff]
    %v1015 = vld [vmem:[#allocation7 + $0xb0] sm:$0xff]
    %v1016 = vld [vmem:[#allocation7 + $0xb8] sm:$0xff]
    %v1017 = vld [vmem:[#allocation7 + $0xc0] sm:$0xff]
    %v1018 = vld [vmem:[#allocation7 + $0xc8] sm:$0xff]
    %v1019 = vld [vmem:[#allocation7 + $0xd0] sm:$0xff]
    %v1020 = vld [vmem:[#allocation7 + $0xd8] sm:$0xff]
    %v1021 = vld [vmem:[#allocation7 + $0xe0] sm:$0xff]
    %v1022 = vld [vmem:[#allocation7 + $0xe8] sm:$0xff]
    %v1023 = vld [vmem:[#allocation7 + $0xf0] sm:$0xff]
    %v1024 = vld [vmem:[#allocation7 + $0xf8] sm:$0xff]
    %v1057 = vunpack.c.l.b16 %v993
    %v1058 = vunpack.c.h.b16 %v993
    %v1059 = vunpack.c.l.b16 %v994
    %v1060 = vunpack.c.h.b16 %v994
    %v1061 = vunpack.c.l.b16 %v995
    %v1062 = vunpack.c.h.b16 %v995
    %v1063 = vunpack.c.l.b16 %v996
    %v1064 = vunpack.c.h.b16 %v996
    %v1065 = vunpack.c.l.b16 %v997
    %v1066 = vunpack.c.h.b16 %v997
    %v1067 = vunpack.c.l.b16 %v998
    %v1068 = vunpack.c.h.b16 %v998
    %v1069 = vunpack.c.l.b16 %v999
    %v1070 = vunpack.c.h.b16 %v999
    %v1071 = vunpack.c.l.b16 %v1000
    %v1072 = vunpack.c.h.b16 %v1000
    %v1073 = vunpack.c.l.b16 %v1001
    %v1074 = vunpack.c.h.b16 %v1001
    %v1075 = vunpack.c.l.b16 %v1002
    %v1076 = vunpack.c.h.b16 %v1002
    %v1077 = vunpack.c.l.b16 %v1003
    %v1078 = vunpack.c.h.b16 %v1003
    %v1079 = vunpack.c.l.b16 %v1004
    %v1080 = vunpack.c.h.b16 %v1004
    %v1081 = vunpack.c.l.b16 %v1005
    %v1082 = vunpack.c.h.b16 %v1005
    %v1083 = vunpack.c.l.b16 %v1006
    %v1084 = vunpack.c.h.b16 %v1006
    %v1085 = vunpack.c.l.b16 %v1007
    %v1086 = vunpack.c.h.b16 %v1007
    %v1087 = vunpack.c.l.b16 %v1008
    %v1088 = vunpack.c.h.b16 %v1008
    %v1089 = vunpack.c.l.b16 %v1009
    %v1090 = vunpack.c.h.b16 %v1009
    %v1091 = vunpack.c.l.b16 %v1010
    %v1092 = vunpack.c.h.b16 %v1010
    %v1093 = vunpack.c.l.b16 %v1011
    %v1094 = vunpack.c.h.b16 %v1011
    %v1095 = vunpack.c.l.b16 %v1012
    %v1096 = vunpack.c.h.b16 %v1012
    %v1097 = vunpack.c.l.b16 %v1013
    %v1098 = vunpack.c.h.b16 %v1013
    %v1099 = vunpack.c.l.b16 %v1014
    %v1100 = vunpack.c.h.b16 %v1014
    %v1101 = vunpack.c.l.b16 %v1015
    %v1102 = vunpack.c.h.b16 %v1015
    %v1103 = vunpack.c.l.b16 %v1016
    %v1104 = vunpack.c.h.b16 %v1016
    %v1105 = vunpack.c.l.b16 %v1017
    %v1106 = vunpack.c.h.b16 %v1017
    %v1107 = vunpack.c.l.b16 %v1018
    %v1108 = vunpack.c.h.b16 %v1018
    %v1109 = vunpack.c.l.b16 %v1019
    %v1110 = vunpack.c.h.b16 %v1019
    %v1111 = vunpack.c.l.b16 %v1020
    %v1112 = vunpack.c.h.b16 %v1020
    %v1113 = vunpack.c.l.b16 %v1021
    %v1114 = vunpack.c.h.b16 %v1021
    %v1115 = vunpack.c.l.b16 %v1022
    %v1116 = vunpack.c.h.b16 %v1022
    %v1117 = vunpack.c.l.b16 %v1023
    %v1118 = vunpack.c.h.b16 %v1023
    %v1119 = vunpack.c.l.b16 %v1024
    %v1120 = vunpack.c.h.b16 %v1024
    %v1121 = vpack.c.b16 %v1059, %v1057
    %v1122 = vpack.c.b16 %v1060, %v1058
    %v1123 = vpack.c.b16 %v1063, %v1061
    %v1124 = vpack.c.b16 %v1064, %v1062
    %v1125 = vpack.c.b16 %v1067, %v1065
    %v1126 = vpack.c.b16 %v1068, %v1066
    %v1127 = vpack.c.b16 %v1071, %v1069
    %v1128 = vpack.c.b16 %v1072, %v1070
    %v1129 = vpack.c.b16 %v1075, %v1073
    %v1130 = vpack.c.b16 %v1076, %v1074
    %v1131 = vpack.c.b16 %v1079, %v1077
    %v1132 = vpack.c.b16 %v1080, %v1078
    %v1133 = vpack.c.b16 %v1083, %v1081
    %v1134 = vpack.c.b16 %v1084, %v1082
    %v1135 = vpack.c.b16 %v1087, %v1085
    %v1136 = vpack.c.b16 %v1088, %v1086
    %v1137 = vpack.c.b16 %v1091, %v1089
    %v1138 = vpack.c.b16 %v1092, %v1090
    %v1139 = vpack.c.b16 %v1095, %v1093
    %v1140 = vpack.c.b16 %v1096, %v1094
    %v1141 = vpack.c.b16 %v1099, %v1097
    %v1142 = vpack.c.b16 %v1100, %v1098
    %v1143 = vpack.c.b16 %v1103, %v1101
    %v1144 = vpack.c.b16 %v1104, %v1102
    %v1145 = vpack.c.b16 %v1107, %v1105
    %v1146 = vpack.c.b16 %v1108, %v1106
    %v1147 = vpack.c.b16 %v1111, %v1109
    %v1148 = vpack.c.b16 %v1112, %v1110
    %v1149 = vpack.c.b16 %v1115, %v1113
    %v1150 = vpack.c.b16 %v1116, %v1114
    %v1151 = vpack.c.b16 %v1119, %v1117
    %v1152 = vpack.c.b16 %v1120, %v1118
    %1185 = vmatprep.subr.bf16.mxu0 %v1122
    %1186 = vmatpush1.bf16.msra.mxu0 %v1121
    %1187 = vmatprep.subr.bf16.mxu0 %v1124
    %1188 = vmatpush1.bf16.msra.mxu0 %v1123
    %1189 = vmatprep.subr.bf16.mxu0 %v1126
    %1190 = vmatpush1.bf16.msra.mxu0 %v1125
    %1191 = vmatprep.subr.bf16.mxu0 %v1128
    %1192 = vmatpush1.bf16.msra.mxu0 %v1127
    %1193 = vmatprep.subr.bf16.mxu0 %v1130
    %1194 = vmatpush1.bf16.msra.mxu0 %v1129
    %1195 = vmatprep.subr.bf16.mxu0 %v1132
    %1196 = vmatpush1.bf16.msra.mxu0 %v1131
    %1197 = vmatprep.subr.bf16.mxu0 %v1134
    %1198 = vmatpush1.bf16.msra.mxu0 %v1133
    %1199 = vmatprep.subr.bf16.mxu0 %v1136
    %1200 = vmatpush1.bf16.msra.mxu0 %v1135
    %1201 = vmatprep.subr.bf16.mxu0 %v1138
    %1202 = vmatpush1.bf16.msra.mxu0 %v1137
    %1203 = vmatprep.subr.bf16.mxu0 %v1140
    %1204 = vmatpush1.bf16.msra.mxu0 %v1139
    %1205 = vmatprep.subr.bf16.mxu0 %v1142
    %1206 = vmatpush1.bf16.msra.mxu0 %v1141
    %1207 = vmatprep.subr.bf16.mxu0 %v1144
    %1208 = vmatpush1.bf16.msra.mxu0 %v1143
    %1209 = vmatprep.subr.bf16.mxu0 %v1146
    %1210 = vmatpush1.bf16.msra.mxu0 %v1145
    %1211 = vmatprep.subr.bf16.mxu0 %v1148
    %1212 = vmatpush1.bf16.msra.mxu0 %v1147
    %1213 = vmatprep.subr.bf16.mxu0 %v1150
    %1214 = vmatpush1.bf16.msra.mxu0 %v1149
    %1215 = vmatprep.subr.bf16.mxu0 %v1152
    %1216 = vmatpush1.bf16.msra.mxu0 %v1151
    %1217 = vmatprep.mubr.bf16.mxu0 %v992
    %1218 = vmatmul.mubr.bf16.gmra.mrb[0].mxu0 %v991
    %v1219 = vpop.f32.mrb[0].mxu0
    %v1220 = vadd.f32 0.0, %v1219
    %v1221 = vpop.f32.mrb[0].mxu0
    %v1222 = vadd.f32 0.0, %v1221
    %v1223 = vpop.f32.mrb[0].mxu0
    %v1224 = vadd.f32 0.0, %v1223
    %v1225 = vpop.f32.mrb[0].mxu0
    %v1226 = vadd.f32 0.0, %v1225
    %1227 = vdwg.mxu0
    %1228 = vrot.lane.b32.xlu0 %v1220, 32
    %v1229 = vpop.permute.xlu0 %1228
    %1230 = vrot.lane.b32.xlu0 %v1224, 32
    %v1231 = vpop.permute.xlu0 %1230
    %1232 = vrot.lane.b32.xlu0 %v1222, 32
    %v1233 = vpop.permute.xlu0 %1232
    %1234 = vrot.lane.b32.xlu0 %v1226, 32
    %v1235 = vpop.permute.xlu0 %1234
    %v1236 = vlaneseq
    %v1237 = vand.u32 %v1236, 127
    %vm1238 = vcmp.lt.s32.totalorder %v1237, 32
    %v1239 = vsel %vm1238, %v1229, %v1233
    %v1240 = vsel %vm1238, %v1231, %v1235
    %v1241 = vsel %vm1238, %v1233, %v1229
    %v1242 = vsel %vm1238, %v1235, %v1231
    %v1243 = vmax.f32 %v1220, %v1241
    %v1244 = vmax.f32 %v1222, %v1239
    %v1245 = vmax.f32 %v1224, %v1242
    %v1246 = vmax.f32 %v1226, %v1240
    %1247 = vrot.lane.b32.xlu0 %v1243, 64
    %v1248 = vpop.permute.xlu0 %1247
    %1249 = vrot.lane.b32.xlu0 %v1245, 64
    %v1250 = vpop.permute.xlu0 %1249
    %1251 = vrot.lane.b32.xlu0 %v1244, 64
    %v1252 = vpop.permute.xlu0 %1251
    %1253 = vrot.lane.b32.xlu0 %v1246, 64
    %v1254 = vpop.permute.xlu0 %1253
    %vm1255 = vcmp.lt.s32.totalorder %v1237, 64
    %v1256 = vsel %vm1255, %v1248, %v1252
    %v1257 = vsel %vm1255, %v1250, %v1254
    %v1258 = vsel %vm1255, %v1252, %v1248
    %v1259 = vsel %vm1255, %v1254, %v1250
    %v1260 = vmax.f32 %v1243, %v1258
    %v1261 = vmax.f32 %v1244, %v1256
    %v1262 = vmax.f32 %v1245, %v1259
    %v1263 = vmax.f32 %v1246, %v1257
    %v1264 = vmax.f32 %v1260, %v1261
    %v1265 = vmax.f32 %v1262, %v1263
    %v1266 = vsub.f32 %v1220, %v1264
    %v1267 = vsub.f32 %v1222, %v1264
    %v1268 = vsub.f32 %v1224, %v1265
    %v1269 = vsub.f32 %v1226, %v1265
    %v1270 = vmul.f32 %v1266, 1.442695
    %v1271 = vpow.pop %v1270
    %v1272 = vmul.f32 %v1267, 1.442695
    %v1273 = vpow.pop %v1272
    %v1274 = vmul.f32 %v1268, 1.442695
    %v1275 = vpow.pop %v1274
    %v1276 = vmul.f32 %v1269, 1.442695
    %v1277 = vpow.pop %v1276
    %1278 = vrot.lane.b32.xlu0 %v1271, 32
    %v1279 = vpop.permute.xlu0 %1278
    %1280 = vrot.lane.b32.xlu0 %v1275, 32
    %v1281 = vpop.permute.xlu0 %1280
    %1282 = vrot.lane.b32.xlu0 %v1273, 32
    %v1283 = vpop.permute.xlu0 %1282
    %1284 = vrot.lane.b32.xlu0 %v1277, 32
    %v1285 = vpop.permute.xlu0 %1284
    %v1286 = vsel %vm1238, %v1279, %v1283
    %v1287 = vsel %vm1238, %v1281, %v1285
    %v1288 = vsel %vm1238, %v1283, %v1279
    %v1289 = vsel %vm1238, %v1285, %v1281
    %v1290 = vadd.f32 %v1271, %v1288
    %v1291 = vadd.f32 %v1273, %v1286
    %v1292 = vadd.f32 %v1275, %v1289
    %v1293 = vadd.f32 %v1277, %v1287
    %1294 = vrot.lane.b32.xlu0 %v1290, 64
    %v1295 = vpop.permute.xlu0 %1294
    %1296 = vrot.lane.b32.xlu0 %v1292, 64
    %v1297 = vpop.permute.xlu0 %1296
    %1298 = vrot.lane.b32.xlu0 %v1291, 64
    %v1299 = vpop.permute.xlu0 %1298
    %1300 = vrot.lane.b32.xlu0 %v1293, 64
    %v1301 = vpop.permute.xlu0 %1300
    %v1302 = vsel %vm1255, %v1295, %v1299
    %v1303 = vsel %vm1255, %v1297, %v1301
    %v1304 = vsel %vm1255, %v1299, %v1295
    %v1305 = vsel %vm1255, %v1301, %v1297
    %v1306 = vadd.f32 %v1290, %v1304
    %v1307 = vadd.f32 %v1291, %v1302
    %v1308 = vadd.f32 %v1292, %v1305
    %v1309 = vadd.f32 %v1293, %v1303
    %v1310 = vadd.f32 %v1306, %v1307
    %v1311 = vadd.f32 %v1308, %v1309
    %v1312 = vrcp.pop %v1310
    %v1313 = vrcp.pop %v1311
    %v1314 = vmul.f32 %v1271, %v1312
    %v1315 = vmul.f32 %v1273, %v1312
    %v1316 = vmul.f32 %v1275, %v1313
    %v1317 = vmul.f32 %v1277, %v1313
    %v1318 = vmul.f32 %v1314, %v979
    %v1319 = vmul.f32 %v1315, %v981
    %v1320 = vmul.f32 %v1316, %v983
    %v1321 = vmul.f32 %v1317, %v985
    %v1322 = vpack.c.bf16 %v1320, %v1318
    %v1323 = vpack.c.bf16 %v1321, %v1319
    %v1324 = vld [vmem:[%s6] sm:$0xf]
    %v1325 = vld [vmem:[%s6 + $0x4] sm:$0xf]
    %v1326 = vld [vmem:[%s6 + $0x8] sm:$0xf]
    %v1327 = vld [vmem:[%s6 + $0xc] sm:$0xf]
    %v1328 = vld [vmem:[%s6 + $0x10] sm:$0xf]
    %v1329 = vld [vmem:[%s6 + $0x14] sm:$0xf]
    %v1330 = vld [vmem:[%s6 + $0x18] sm:$0xf]
    %v1331 = vld [vmem:[%s6 + $0x1c] sm:$0xf]
    %v1332 = vld [vmem:[%s6 + $0x20] sm:$0xf]
    %v1333 = vld [vmem:[%s6 + $0x24] sm:$0xf]
    %v1334 = vld [vmem:[%s6 + $0x28] sm:$0xf]
    %v1335 = vld [vmem:[%s6 + $0x2c] sm:$0xf]
    %v1336 = vld [vmem:[%s6 + $0x30] sm:$0xf]
    %v1337 = vld [vmem:[%s6 + $0x34] sm:$0xf]
    %v1338 = vld [vmem:[%s6 + $0x38] sm:$0xf]
    %v1339 = vld [vmem:[%s6 + $0x3c] sm:$0xf]
    %v1340 = vld [vmem:[%s6 + $0x40] sm:$0xf]
    %v1341 = vld [vmem:[%s6 + $0x44] sm:$0xf]
    %v1342 = vld [vmem:[%s6 + $0x48] sm:$0xf]
    %v1343 = vld [vmem:[%s6 + $0x4c] sm:$0xf]
    %v1344 = vld [vmem:[%s6 + $0x50] sm:$0xf]
    %v1345 = vld [vmem:[%s6 + $0x54] sm:$0xf]
    %v1346 = vld [vmem:[%s6 + $0x58] sm:$0xf]
    %v1347 = vld [vmem:[%s6 + $0x5c] sm:$0xf]
    %v1348 = vld [vmem:[%s6 + $0x60] sm:$0xf]
    %v1349 = vld [vmem:[%s6 + $0x64] sm:$0xf]
    %v1350 = vld [vmem:[%s6 + $0x68] sm:$0xf]
    %v1351 = vld [vmem:[%s6 + $0x6c] sm:$0xf]
    %v1352 = vld [vmem:[%s6 + $0x70] sm:$0xf]
    %v1353 = vld [vmem:[%s6 + $0x74] sm:$0xf]
    %v1354 = vld [vmem:[%s6 + $0x78] sm:$0xf]
    %v1355 = vld [vmem:[%s6 + $0x7c] sm:$0xf]
    %v1356 = vld [vmem:[%s7] sm:$0x1]
    %v1358 = vlaneseq
    %v1359 = vshrl.u32 %v1358, 7
    %v1360 = vsub.s32 0, %v1359
    %v1361 = vrot.slane %v1356, %v1360
    %v1395 = vunpack.c.l.b16 %v1324
    %v1396 = vunpack.c.l.b16 %v1325
    %v1397 = vunpack.c.l.b16 %v1326
    %v1398 = vunpack.c.l.b16 %v1327
    %v1399 = vunpack.c.l.b16 %v1328
    %v1400 = vunpack.c.l.b16 %v1329
    %v1401 = vunpack.c.l.b16 %v1330
    %v1402 = vunpack.c.l.b16 %v1331
    %v1403 = vunpack.c.l.b16 %v1332
    %v1404 = vunpack.c.l.b16 %v1333
    %v1405 = vunpack.c.l.b16 %v1334
    %v1406 = vunpack.c.l.b16 %v1335
    %v1407 = vunpack.c.l.b16 %v1336
    %v1408 = vunpack.c.l.b16 %v1337
    %v1409 = vunpack.c.l.b16 %v1338
    %v1410 = vunpack.c.l.b16 %v1339
    %v1411 = vunpack.c.l.b16 %v1340
    %v1412 = vunpack.c.l.b16 %v1341
    %v1413 = vunpack.c.l.b16 %v1342
    %v1414 = vunpack.c.l.b16 %v1343
    %v1415 = vunpack.c.l.b16 %v1344
    %v1416 = vunpack.c.l.b16 %v1345
    %v1417 = vunpack.c.l.b16 %v1346
    %v1418 = vunpack.c.l.b16 %v1347
    %v1419 = vunpack.c.l.b16 %v1348
    %v1420 = vunpack.c.l.b16 %v1349
    %v1421 = vunpack.c.l.b16 %v1350
    %v1422 = vunpack.c.l.b16 %v1351
    %v1423 = vunpack.c.l.b16 %v1352
    %v1424 = vunpack.c.l.b16 %v1353
    %v1425 = vunpack.c.l.b16 %v1354
    %v1426 = vunpack.c.l.b16 %v1355
    %v1427 = vpack.c.b16 %v1396, %v1395
    %v1428 = vpack.c.b16 %v1398, %v1397
    %v1429 = vpack.c.b16 %v1400, %v1399
    %v1430 = vpack.c.b16 %v1402, %v1401
    %v1431 = vpack.c.b16 %v1404, %v1403
    %v1432 = vpack.c.b16 %v1406, %v1405
    %v1433 = vpack.c.b16 %v1408, %v1407
    %v1434 = vpack.c.b16 %v1410, %v1409
    %v1435 = vpack.c.b16 %v1412, %v1411
    %v1436 = vpack.c.b16 %v1414, %v1413
    %v1437 = vpack.c.b16 %v1416, %v1415
    %v1438 = vpack.c.b16 %v1418, %v1417
    %v1439 = vpack.c.b16 %v1420, %v1419
    %v1440 = vpack.c.b16 %v1422, %v1421
    %v1441 = vpack.c.b16 %v1424, %v1423
    %v1442 = vpack.c.b16 %v1426, %v1425
    %1459 = vmatprep.subr.bf16.mxu0 0
    %1460 = vmatpush1.bf16.msra.mxu0 %v1427
    %1461 = vmatprep.subr.bf16.mxu0 0
    %1462 = vmatpush1.bf16.msra.mxu0 %v1428
    %1463 = vmatprep.subr.bf16.mxu0 0
    %1464 = vmatpush1.bf16.msra.mxu0 %v1429
    %1465 = vmatprep.subr.bf16.mxu0 0
    %1466 = vmatpush1.bf16.msra.mxu0 %v1430
    %1467 = vmatprep.subr.bf16.mxu0 0
    %1468 = vmatpush1.bf16.msra.mxu0 %v1431
    %1469 = vmatprep.subr.bf16.mxu0 0
    %1470 = vmatpush1.bf16.msra.mxu0 %v1432
    %1471 = vmatprep.subr.bf16.mxu0 0
    %1472 = vmatpush1.bf16.msra.mxu0 %v1433
    %1473 = vmatprep.subr.bf16.mxu0 0
    %1474 = vmatpush1.bf16.msra.mxu0 %v1434
    %1475 = vmatprep.subr.bf16.mxu0 0
    %1476 = vmatpush1.bf16.msra.mxu0 %v1435
    %1477 = vmatprep.subr.bf16.mxu0 0
    %1478 = vmatpush1.bf16.msra.mxu0 %v1436
    %1479 = vmatprep.subr.bf16.mxu0 0
    %1480 = vmatpush1.bf16.msra.mxu0 %v1437
    %1481 = vmatprep.subr.bf16.mxu0 0
    %1482 = vmatpush1.bf16.msra.mxu0 %v1438
    %1483 = vmatprep.subr.bf16.mxu0 0
    %1484 = vmatpush1.bf16.msra.mxu0 %v1439
    %1485 = vmatprep.subr.bf16.mxu0 0
    %1486 = vmatpush1.bf16.msra.mxu0 %v1440
    %1487 = vmatprep.subr.bf16.mxu0 0
    %1488 = vmatpush1.bf16.msra.mxu0 %v1441
    %1489 = vmatprep.subr.bf16.mxu0 0
    %1490 = vmatpush1.bf16.msra.mxu0 %v1442
    %1491 = vmatprep.mubr.bf16.mxu0 %v1323
    %1492 = vmatmul.mubr.bf16.gmra.mrb[0].mxu0 %v1322
    %v1493 = vpop.f32.mrb[0].mxu0
    %v1494 = vadd.f32 %v1361, %v1493
    %v1495 = vpop.f32.mrb[0].mxu0
    %v1496 = vpop.f32.mrb[0].mxu0
    %v1497 = vadd.f32 %v1361, %v1496
    %v1498 = vpop.f32.mrb[0].mxu0
    %1499 = vdwg.mxu0
    %1502 = vrot.lane.b32.xlu0 %v1494, 96
    %v1503 = vpop.permute.xlu0 %1502
    %1504 = vrot.lane.b32.xlu0 %v1497, 96
    %v1505 = vpop.permute.xlu0 %1504
    %v1508 = vadd.f32 %v242, %v1503
    %v1509 = vadd.f32 %v246, %v1505
    %v1510 = vld [vmem:[%s12] sm:$0x1]
    %v1511 = vld [vmem:[%s13] sm:$0x1]
    %1514 = vrot.lane.b32.xlu0 %v1508, 32
    %v1515 = vpop.permute.xlu0 %1514
    %1516 = vrot.lane.b32.xlu0 %v1509, 32
    %v1517 = vpop.permute.xlu0 %1516
    %vm1520 = vcmask 261120
    %v1521 = vsel %vm1520, %v1515, 0.0
    %1522 = vadd.xlane.f32.xlu0 %v1521
    %v1523 = vpop.xlane.xlu0 %1522
    %v1524 = vsel %vm1520, %v1517, 0.0
    %1525 = vadd.xlane.f32.xlu0 %v1524
    %v1526 = vpop.xlane.xlu0 %1525
    %v1527 = vrcp.pop 32.0
    %v1528 = vmul.f32 %v1523, %v1527
    %v1529 = vmul.f32 %v1526, %v1527
    %v1530 = vsub.f32 %v1508, %v1528
    %v1531 = vsub.f32 %v1509, %v1529
    %v1532 = vmul.f32 %v1530, %v1530
    %v1533 = vmul.f32 %v1531, %v1531
    %1536 = vrot.lane.b32.xlu0 %v1532, 32
    %v1537 = vpop.permute.xlu0 %1536
    %1538 = vrot.lane.b32.xlu0 %v1533, 32
    %v1539 = vpop.permute.xlu0 %1538
    %v1542 = vsel %vm1520, %v1537, 0.0
    %1543 = vadd.xlane.f32.xlu0 %v1542
    %v1544 = vpop.xlane.xlu0 %1543
    %v1545 = vsel %vm1520, %v1539, 0.0
    %1546 = vadd.xlane.f32.xlu0 %v1545
    %v1547 = vpop.xlane.xlu0 %1546
    %v1548 = vmul.f32 %v1544, %v1527
    %v1549 = vmul.f32 %v1547, %v1527
    %v1550 = vadd.f32 %v1548, 1e-05
    %v1551 = vadd.f32 %v1549, 1e-05
    %v1552 = vrsqrt.pop %v1550
    %v1553 = vrsqrt.pop %v1551
    %v1554 = vmul.f32 %v1530, %v1552
    %v1555 = vmul.f32 %v1531, %v1553
    %v1557 = vlaneseq
    %v1558 = vshrl.u32 %v1557, 7
    %v1559 = vsub.s32 0, %v1558
    %v1560 = vrot.slane %v1510, %v1559
    %1561 = vrot.lane.b32.xlu0 %v1560, 96
    %v1562 = vpop.permute.xlu0 %1561
    %v1564 = vmul.f32 %v1554, %v1562
    %v1565 = vmul.f32 %v1555, %v1562
    %v1567 = vlaneseq
    %v1568 = vshrl.u32 %v1567, 7
    %v1569 = vsub.s32 0, %v1568
    %v1570 = vrot.slane %v1511, %v1569
    %1571 = vrot.lane.b32.xlu0 %v1570, 96
    %v1572 = vpop.permute.xlu0 %1571
    %v1574 = vadd.f32 %v1564, %v1572
    %v1575 = vadd.f32 %v1565, %v1572
    %v1576 = vpack.c.bf16 %v1575, %v1574
    %v1577 = vld [vmem:[%s8] sm:$0xf]
    %v1578 = vld [vmem:[%s8 + $0x4] sm:$0xf]
    %v1579 = vld [vmem:[%s8 + $0x8] sm:$0xf]
    %v1580 = vld [vmem:[%s8 + $0xc] sm:$0xf]
    %v1581 = vld [vmem:[%s9] sm:$0x1]
    %v1583 = vlaneseq
    %v1584 = vshrl.u32 %v1583, 7
    %v1585 = vsub.s32 0, %v1584
    %v1586 = vrot.slane %v1581, %v1585
    %1589 = vrot.lane.b32.xlu0 %v1576, 32
    %v1590 = vpop.permute.xlu0 %1589
    %v1595 = vunpack.c.l.b16 %v1577
    %v1596 = vunpack.c.l.b16 %v1578
    %v1597 = vunpack.c.l.b16 %v1579
    %v1598 = vunpack.c.l.b16 %v1580
    %v1599 = vpack.c.b16 %v1596, %v1595
    %v1600 = vpack.c.b16 %v1598, %v1597
    %v1604 = vsel %vm1520, %v1590, 0
    %1606 = vmatprep.subr.bf16.mxu0 0
    %1607 = vmatpush1.bf16.msra.mxu0 %v1599
    %1608 = vmatprep.subr.bf16.mxu0 0
    %1609 = vmatpush1.bf16.msra.mxu0 %v1600
    %1610 = vmatprep.subr.bf16.mxu0 0
    %1611 = vmatpush1.bf16.msra.mxu0 0
    %1612 = vmatprep.subr.bf16.mxu0 0
    %1613 = vmatpush1.bf16.msra.mxu0 0
    %1614 = vmatprep.subr.bf16.mxu0 0
    %1615 = vmatpush1.bf16.msra.mxu0 0
    %1616 = vmatprep.subr.bf16.mxu0 0
    %1617 = vmatpush1.bf16.msra.mxu0 0
    %1618 = vmatprep.subr.bf16.mxu0 0
    %1619 = vmatpush1.bf16.msra.mxu0 0
    %1620 = vmatprep.subr.bf16.mxu0 0
    %1621 = vmatpush1.bf16.msra.mxu0 0
    %1622 = vmatprep.subr.bf16.mxu0 0
    %1623 = vmatpush1.bf16.msra.mxu0 0
    %1624 = vmatprep.subr.bf16.mxu0 0
    %1625 = vmatpush1.bf16.msra.mxu0 0
    %1626 = vmatprep.subr.bf16.mxu0 0
    %1627 = vmatpush1.bf16.msra.mxu0 0
    %1628 = vmatprep.subr.bf16.mxu0 0
    %1629 = vmatpush1.bf16.msra.mxu0 0
    %1630 = vmatprep.subr.bf16.mxu0 0
    %1631 = vmatpush1.bf16.msra.mxu0 0
    %1632 = vmatprep.subr.bf16.mxu0 0
    %1633 = vmatpush1.bf16.msra.mxu0 0
    %1634 = vmatprep.subr.bf16.mxu0 0
    %1635 = vmatpush1.bf16.msra.mxu0 0
    %1636 = vmatprep.subr.bf16.mxu0 0
    %1637 = vmatpush1.bf16.msra.mxu0 0
    %1638 = vmatprep.mubr.bf16.mxu0 0
    %1639 = vmatmul.mubr.bf16.gmra.mrb[0].mxu0 %v1604
    %v1640 = vpop.f32.mrb[0].mxu0
    %v1641 = vadd.f32 %v1586, %v1640
    %v1642 = vpop.f32.mrb[0].mxu0
    %v1643 = vpop.f32.mrb[0].mxu0
    %v1644 = vadd.f32 %v1586, %v1643
    %v1645 = vpop.f32.mrb[0].mxu0
    %1646 = vdwg.mxu0
    %v1647 = vmax.f32 %v1641, 0.0
    %v1648 = vmax.f32 %v1644, 0.0
    %v1649 = vpack.c.bf16 %v1648, %v1647
    %v1650 = vld [vmem:[%s10] sm:$0xf]
    %v1651 = vld [vmem:[%s10 + $0x4] sm:$0xf]
    %v1652 = vld [vmem:[%s10 + $0x8] sm:$0xf]
    %v1653 = vld [vmem:[%s10 + $0xc] sm:$0xf]
    %v1654 = vld [vmem:[%s11] sm:$0x1]
    %v1656 = vlaneseq
    %v1657 = vshrl.u32 %v1656, 7
    %v1658 = vsub.s32 0, %v1657
    %v1659 = vrot.slane %v1654, %v1658
    %v1665 = vunpack.c.l.b16 %v1650
    %v1666 = vunpack.c.l.b16 %v1651
    %v1667 = vunpack.c.l.b16 %v1652
    %v1668 = vunpack.c.l.b16 %v1653
    %v1669 = vpack.c.b16 %v1666, %v1665
    %v1670 = vpack.c.b16 %v1668, %v1667
    %v1674 = vsel %vm1520, %v1649, 0
    %1676 = vmatprep.subr.bf16.mxu0 0
    %1677 = vmatpush1.bf16.msra.mxu0 %v1669
    %1678 = vmatprep.subr.bf16.mxu0 0
    %1679 = vmatpush1.bf16.msra.mxu0 %v1670
    %1680 = vmatprep.subr.bf16.mxu0 0
    %1681 = vmatpush1.bf16.msra.mxu0 0
    %1682 = vmatprep.subr.bf16.mxu0 0
    %1683 = vmatpush1.bf16.msra.mxu0 0
    %1684 = vmatprep.subr.bf16.mxu0 0
    %1685 = vmatpush1.bf16.msra.mxu0 0
    %1686 = vmatprep.subr.bf16.mxu0 0
    %1687 = vmatpush1.bf16.msra.mxu0 0
    %1688 = vmatprep.subr.bf16.mxu0 0
    %1689 = vmatpush1.bf16.msra.mxu0 0
    %1690 = vmatprep.subr.bf16.mxu0 0
    %1691 = vmatpush1.bf16.msra.mxu0 0
    %1692 = vmatprep.subr.bf16.mxu0 0
    %1693 = vmatpush1.bf16.msra.mxu0 0
    %1694 = vmatprep.subr.bf16.mxu0 0
    %1695 = vmatpush1.bf16.msra.mxu0 0
    %1696 = vmatprep.subr.bf16.mxu0 0
    %1697 = vmatpush1.bf16.msra.mxu0 0
    %1698 = vmatprep.subr.bf16.mxu0 0
    %1699 = vmatpush1.bf16.msra.mxu0 0
    %1700 = vmatprep.subr.bf16.mxu0 0
    %1701 = vmatpush1.bf16.msra.mxu0 0
    %1702 = vmatprep.subr.bf16.mxu0 0
    %1703 = vmatpush1.bf16.msra.mxu0 0
    %1704 = vmatprep.subr.bf16.mxu0 0
    %1705 = vmatpush1.bf16.msra.mxu0 0
    %1706 = vmatprep.subr.bf16.mxu0 0
    %1707 = vmatpush1.bf16.msra.mxu0 0
    %1708 = vmatprep.mubr.bf16.mxu0 0
    %1709 = vmatmul.mubr.bf16.gmra.mrb[0].mxu0 %v1674
    %v1710 = vpop.f32.mrb[0].mxu0
    %v1711 = vadd.f32 %v1659, %v1710
    %v1712 = vpop.f32.mrb[0].mxu0
    %v1713 = vpop.f32.mrb[0].mxu0
    %v1714 = vadd.f32 %v1659, %v1713
    %v1715 = vpop.f32.mrb[0].mxu0
    %1716 = vdwg.mxu0
    %1719 = vrot.lane.b32.xlu0 %v1711, 96
    %v1720 = vpop.permute.xlu0 %1719
    %1721 = vrot.lane.b32.xlu0 %v1714, 96
    %v1722 = vpop.permute.xlu0 %1721
    %v1725 = vadd.f32 %v1574, %v1720
    %v1726 = vadd.f32 %v1575, %v1722
    %v1727 = vld [vmem:[%s14] sm:$0x1]
    %v1728 = vld [vmem:[%s15] sm:$0x1]
    %1731 = vrot.lane.b32.xlu0 %v1725, 32
    %v1732 = vpop.permute.xlu0 %1731
    %1733 = vrot.lane.b32.xlu0 %v1726, 32
    %v1734 = vpop.permute.xlu0 %1733
    %v1737 = vsel %vm1520, %v1732, 0.0
    %1738 = vadd.xlane.f32.xlu0 %v1737
    %v1739 = vpop.xlane.xlu0 %1738
    %v1740 = vsel %vm1520, %v1734, 0.0
    %1741 = vadd.xlane.f32.xlu0 %v1740
    %v1742 = vpop.xlane.xlu0 %1741
    %v1743 = vmul.f32 %v1739, %v1527
    %v1744 = vmul.f32 %v1742, %v1527
    %v1745 = vsub.f32 %v1725, %v1743
    %v1746 = vsub.f32 %v1726, %v1744
    %v1747 = vmul.f32 %v1745, %v1745
    %v1748 = vmul.f32 %v1746, %v1746
    %1751 = vrot.lane.b32.xlu0 %v1747, 32
    %v1752 = vpop.permute.xlu0 %1751
    %1753 = vrot.lane.b32.xlu0 %v1748, 32
    %v1754 = vpop.permute.xlu0 %1753
    %v1757 = vsel %vm1520, %v1752, 0.0
    %1758 = vadd.xlane.f32.xlu0 %v1757
    %v1759 = vpop.xlane.xlu0 %1758
    %v1760 = vsel %vm1520, %v1754, 0.0
    %1761 = vadd.xlane.f32.xlu0 %v1760
    %v1762 = vpop.xlane.xlu0 %1761
    %v1763 = vmul.f32 %v1759, %v1527
    %v1764 = vmul.f32 %v1762, %v1527
    %v1765 = vadd.f32 %v1763, 1e-05
    %v1766 = vadd.f32 %v1764, 1e-05
    %v1767 = vrsqrt.pop %v1765
    %v1768 = vrsqrt.pop %v1766
    %v1769 = vmul.f32 %v1745, %v1767
    %v1770 = vmul.f32 %v1746, %v1768
    %v1772 = vlaneseq
    %v1773 = vshrl.u32 %v1772, 7
    %v1774 = vsub.s32 0, %v1773
    %v1775 = vrot.slane %v1727, %v1774
    %1776 = vrot.lane.b32.xlu0 %v1775, 96
    %v1777 = vpop.permute.xlu0 %1776
    %v1779 = vmul.f32 %v1769, %v1777
    %v1780 = vmul.f32 %v1770, %v1777
    %v1782 = vlaneseq
    %v1783 = vshrl.u32 %v1782, 7
    %v1784 = vsub.s32 0, %v1783
    %v1785 = vrot.slane %v1728, %v1784
    %1786 = vrot.lane.b32.xlu0 %v1785, 96
    %v1787 = vpop.permute.xlu0 %1786
    %v1789 = vadd.f32 %v1779, %v1787
    %v1790 = vadd.f32 %v1780, %v1787
    %1793 = vrot.lane.b32.xlu0 %v1789, 32
    %v1794 = vpop.permute.xlu0 %1793
    %1795 = vrot.lane.b32.xlu0 %v1790, 32
    %v1796 = vpop.permute.xlu0 %1795
    %1799 = vst.msk [vmem:[#allocation8] sm:$0xff] %vm1520, %v1794
    %1800 = vst.msk [vmem:[#allocation8 + $0x8] sm:$0xff] %vm1520, %v1796
    // Predicated region
    $region78: #{tpu_custom_call.1} parent=1 // pred_check
      _
    $region79: #{tpu_custom_call.1} parent=1 // pred_check_branch
      %1802 = sbr.rel (0) target = $region81
    $region80: #{tpu_custom_call.1} parent=1 // pred_region
      %s1804 = ssub.s32 256, 256
      %1805 = vsyncadd [#allocation4], %s1804
      %s1806 = sshll.u32 [#allocation8], 4
      %s1807 = int_to_ptr.vmem [resolvable:$true] %s1806
      %1812 = dma.vmem_to_hbm [thread:$0]  %s1807, 256, %s16, [#allocation4], 128, 128, 8
    $region81: #{tpu_custom_call.1} parent=1 // pred_fallthru
      _
    // Predicated region
    $region82: #{tpu_custom_call.1} parent=1 // pred_check
      _
    $region83: #{tpu_custom_call.1} parent=1 // pred_check_branch
      %1814 = sbr.rel (0) target = $region85
    $region84: #{tpu_custom_call.1} parent=1 // pred_region
      %1815 = dma.done [#allocation4], 256
    $region85: #{tpu_custom_call.1} parent=1 // pred_fallthru
      _
    %1816 = vsyncpa [#allocation3], 1
    %1817 = vsyncpa [#allocation6], 1
    %1818 = vsyncpa [#allocation4], 1

</llo_original>
